<compile_context>
chip_gen: v6e
topology: v6e:2x2x1
jax: 0.10.0
libtpu: 0.0.40
codegen_flags: <defaults>
</compile_context>

<pallas_src>
import functools

import jax
import jax.numpy as jnp
from jax.experimental import pallas as pl
from jax.experimental.pallas import tpu as pltpu


# ----------------------------------------------------------------------------
# Helpers
# ----------------------------------------------------------------------------

def _round_up(x, m):
    return ((x + m - 1) // m) * m


def _pad2(a, rows, cols):
    return jnp.pad(a, ((0, rows - a.shape[0]), (0, cols - a.shape[1])))


# ----------------------------------------------------------------------------
# Fused Pallas kernel
#   grid = (num_layers, num_edge_tiles)
#   scratch: h (f32), h_bf16 (MXU operand copy), agg accumulator (f32)
# ----------------------------------------------------------------------------

def gine_fused_kernel(src_ref, dst_ref, bat_ref, mask_ref, x_ref, ea_ref,
                      w1_ref, b1_ref, w2_ref, b2_ref,
                      w3_ref, b3_ref, w4_ref, b4_ref,
                      o_ref, h_sc, hbf_sc, agg_sc):
    l = pl.program_id(0)
    e = pl.program_id(1)
    n_layers = pl.num_programs(0)
    n_etiles = pl.num_programs(1)

    E_tile = src_ref.shape[0]
    N_pad = h_sc.shape[0]
    B_pad = o_ref.shape[0]

    # ---- one-time init: node features -> resident h (f32 + bf16 MXU copy)
    @pl.when((l == 0) & (e == 0))
    def _init():
        h0 = x_ref[...]
        h_sc[...] = h0
        hbf_sc[...] = h0.astype(jnp.bfloat16)

    # ---- per-layer: zero the aggregation accumulator on the first edge tile
    @pl.when(e == 0)
    def _zero_agg():
        agg_sc[...] = jnp.zeros_like(agg_sc)

    # ---- edge tile: gather x[src], ReLU message, scatter-add to dst nodes.
    # One-hot operands are built directly in bf16 (exact 0/1); padded edges
    # carry out-of-range indices and therefore contribute nothing.
    n_iota_en = jax.lax.broadcasted_iota(jnp.int32, (E_tile, N_pad), 1)
    g_src = (src_ref[...] == n_iota_en).astype(jnp.bfloat16)          # [Et, N]
    n_iota_ne = jax.lax.broadcasted_iota(jnp.int32, (N_pad, E_tile), 0)
    g_dst_t = (n_iota_ne == dst_ref[...]).astype(jnp.bfloat16)        # [N, Et]

    xs = jnp.dot(g_src, hbf_sc[...],
                 preferred_element_type=jnp.float32)                  # [Et, D]
    msg = jnp.maximum(xs + ea_ref[...], 0.0)                          # ReLU msg
    agg_sc[...] += jnp.dot(g_dst_t, msg.astype(jnp.bfloat16),
                           preferred_element_type=jnp.float32)        # [N, D]

    # ---- layer epilogue on the last edge tile:
    #      GINE MLP (BN folded into w2/b2) -> ReLU -> residual, padded rows
    #      masked to stay exactly zero.
    @pl.when(e == n_etiles - 1)
    def _finish_layer():
        pre = (h_sc[...] + agg_sc[...]).astype(jnp.bfloat16)          # eps = 0
        h1 = jnp.maximum(
            jnp.dot(pre, w1_ref[0], preferred_element_type=jnp.float32)
            + b1_ref[0], 0.0)                                         # [N, 2D]
        h2 = (jnp.dot(h1.astype(jnp.bfloat16), w2_ref[0],
                      preferred_element_type=jnp.float32)
              + b2_ref[0])                                            # [N, D], BN folded
        h_new = jnp.maximum(h2, 0.0) * mask_ref[...] + h_sc[...]
        h_sc[...] = h_new
        hbf_sc[...] = h_new.astype(jnp.bfloat16)

    # ---- readout on the very last grid step:
    #      global_add_pool + Lin(D,2D) (BN folded) -> ReLU -> Lin(2D,T)
    @pl.when((e == n_etiles - 1) & (l == n_layers - 1))
    def _head():
        b_iota = jax.lax.broadcasted_iota(jnp.int32, (B_pad, N_pad), 0)
        pool = (b_iota == bat_ref[...]).astype(jnp.bfloat16)          # [B, N]
        g = jnp.dot(pool, hbf_sc[...],
                    preferred_element_type=jnp.float32)               # [B, D]
        y1 = jnp.maximum(
            jnp.dot(g.astype(jnp.bfloat16), w3_ref[...],
                    preferred_element_type=jnp.float32) + b3_ref[...], 0.0)
        o_ref[...] = (jnp.dot(y1.astype(jnp.bfloat16), w4_ref[...],
                              preferred_element_type=jnp.float32)
                      + b4_ref[...])                                  # [B, T_pad]


# ----------------------------------------------------------------------------
# Parameter init (deterministic, mirrors PyTorch default inits)
# ----------------------------------------------------------------------------

def _linear_init(key, fan_in, fan_out):
    """PyTorch nn.Linear default: U(-1/sqrt(fan_in), 1/sqrt(fan_in)).
    Weight stored as [in, out] (transposed vs torch) so kernel does x @ W."""
    kw, kb = jax.random.split(key)
    bound = 1.0 / jnp.sqrt(fan_in)
    w = jax.random.uniform(kw, (fan_in, fan_out), jnp.float32, -bound, bound)
    b = jax.random.uniform(kb, (1, fan_out), jnp.float32, -bound, bound)
    return w, b


def _bn_fold(key, dim, eps=1e-5):
    """BatchNorm1d eval-mode folded scale/shift with deterministic stats."""
    k1, k2, k3, k4 = jax.random.split(key, 4)
    gamma = 1.0 + 0.1 * jax.random.normal(k1, (1, dim), jnp.float32)
    beta = 0.1 * jax.random.normal(k2, (1, dim), jnp.float32)
    rmean = 0.1 * jax.random.normal(k3, (1, dim), jnp.float32)
    rvar = 1.0 + 0.1 * jax.random.uniform(k4, (1, dim), jnp.float32)
    scale = gamma / jnp.sqrt(rvar + eps)
    shift = beta - rmean * scale
    return scale, shift


def init_params(key, emb_dim, num_layers, num_tasks):
    keys = jax.random.split(key, 3 + 4 * num_layers)
    ki = iter(keys)
    # feature encoder: Embedding(21, emb_dim) with xavier_normal_
    std = jnp.sqrt(2.0 / (21 + emb_dim))
    emb_table = std * jax.random.normal(next(ki), (21, emb_dim), jnp.float32)
    layers = []
    for _ in range(num_layers):
        w1, b1 = _linear_init(next(ki), emb_dim, 2 * emb_dim)
        w2, b2 = _linear_init(next(ki), 2 * emb_dim, emb_dim)
        bns, bnb = _bn_fold(next(ki), emb_dim)
        _ = next(ki)  # keep split count stable
        layers.append(dict(w1=w1, b1=b1, w2=w2, b2=b2,
                           bn_scale=bns, bn_shift=bnb))
    w3, b3 = _linear_init(next(ki), emb_dim, 2 * emb_dim)
    bn2s, bn2b = _bn_fold(next(ki), 2 * emb_dim)
    w4, b4 = _linear_init(jax.random.fold_in(key, 777), 2 * emb_dim, num_tasks)
    head = dict(w3=w3, b3=b3, bn2_scale=bn2s, bn2_shift=bn2b, w4=w4, b4=b4)
    return emb_table, layers, head


# ----------------------------------------------------------------------------
# One-time parameter prep: pad/stack, fold eval-mode BN into Linears, cast
# matmul weights to bf16.  Done once at init, not per forward call.
# ----------------------------------------------------------------------------

def prepare_params(emb_table, layer_params, head_params, num_tasks):
    D = emb_table.shape[1]
    H = 2 * D
    D_pad = _round_up(D, 128)
    H_pad = _round_up(H, 128)
    T_pad = _round_up(num_tasks, 128)

    w1 = jnp.stack([_pad2(p["w1"], D_pad, H_pad)
                    for p in layer_params]).astype(jnp.bfloat16)     # [L, D, 2D]
    b1 = jnp.stack([_pad2(p["b1"], 1, H_pad) for p in layer_params])  # [L, 1, 2D]
    # fold per-layer eval BN (y*scale + shift) into the second GINE-MLP Linear
    w2 = jnp.stack([_pad2(p["w2"] * p["bn_scale"], H_pad, D_pad)
                    for p in layer_params]).astype(jnp.bfloat16)     # [L, 2D, D]
    b2 = jnp.stack([_pad2(p["b2"] * p["bn_scale"] + p["bn_shift"], 1, D_pad)
                    for p in layer_params])                          # [L, 1, D]
    # fold head BN into the first head Linear
    w3 = _pad2(head_params["w3"] * head_params["bn2_scale"],
               D_pad, H_pad).astype(jnp.bfloat16)
    b3 = _pad2(head_params["b3"] * head_params["bn2_scale"]
               + head_params["bn2_shift"], 1, H_pad)
    w4 = _pad2(head_params["w4"], H_pad, T_pad).astype(jnp.bfloat16)
    b4 = _pad2(head_params["b4"], 1, T_pad)
    return dict(emb=emb_table.astype(jnp.float32),
                w1=w1, b1=b1, w2=w2, b2=b2, w3=w3, b3=b3, w4=w4, b4=b4)


# ----------------------------------------------------------------------------
# Forward pass (jitted wrapper; whole hot path in one pallas_call)
# ----------------------------------------------------------------------------

@functools.partial(jax.jit, static_argnames=("num_graphs", "num_tasks"))
def _forward_impl(x, edge_index, edge_attr, batch, params, num_graphs, num_tasks):
    N = x.shape[0]
    E = edge_index.shape[1]
    D = params["emb"].shape[1]
    L, D_pad, H_pad = params["w1"].shape
    T_pad = params["w4"].shape[1]

    N_pad = _round_up(N, 8)
    B_pad = _round_up(num_graphs, 8)
    E_tile = min(256, _round_up(E, 8))      # edge tile (multiple of 8; 256 cap)
    E_pad = _round_up(E, E_tile)
    n_etiles = E_pad // E_tile

    # feature encoder: Embedding lookup (x[:, 0] instead of squeeze)
    h0 = jnp.take(params["emb"], x[:, 0].astype(jnp.int32), axis=0)
    h0 = jnp.pad(h0, ((0, N_pad - N), (0, D_pad - D)))                # [N_pad, D_pad]

    ea = jnp.pad(edge_attr.astype(jnp.float32),
                 ((0, E_pad - E), (0, D_pad - D)))                    # [E_pad, D_pad]

    # int32 index vectors; padded entries point out of range (no contribution)
    src = jnp.pad(edge_index[0].astype(jnp.int32), (0, E_pad - E),
                  constant_values=N_pad)[:, None]                     # [E_pad, 1]
    dst = jnp.pad(edge_index[1].astype(jnp.int32), (0, E_pad - E),
                  constant_values=N_pad)[None, :]                     # [1, E_pad]
    bat = jnp.pad(batch.astype(jnp.int32), (0, N_pad - N),
                  constant_values=B_pad)[None, :]                     # [1, N_pad]
    node_mask = (jnp.arange(N_pad) < N).astype(jnp.float32)[:, None]  # [N_pad, 1]

    in_specs = [
        pl.BlockSpec((E_tile, 1), lambda l, e: (e, 0)),               # src
        pl.BlockSpec((1, E_tile), lambda l, e: (0, e)),               # dst
        pl.BlockSpec((1, N_pad), lambda l, e: (0, 0)),                # batch
        pl.BlockSpec((N_pad, 1), lambda l, e: (0, 0)),                # node mask
        pl.BlockSpec((N_pad, D_pad), lambda l, e: (0, 0)),            # h0
        pl.BlockSpec((E_tile, D_pad), lambda l, e: (e, 0)),           # edge_attr
        pl.BlockSpec((1, D_pad, H_pad), lambda l, e: (l, 0, 0)),      # w1
        pl.BlockSpec((1, 1, H_pad), lambda l, e: (l, 0, 0)),          # b1
        pl.BlockSpec((1, H_pad, D_pad), lambda l, e: (l, 0, 0)),      # w2 (BN folded)
        pl.BlockSpec((1, 1, D_pad), lambda l, e: (l, 0, 0)),          # b2 (BN folded)
        pl.BlockSpec((D_pad, H_pad), lambda l, e: (0, 0)),            # w3 (BN folded)
        pl.BlockSpec((1, H_pad), lambda l, e: (0, 0)),                # b3 (BN folded)
        pl.BlockSpec((H_pad, T_pad), lambda l, e: (0, 0)),            # w4
        pl.BlockSpec((1, T_pad), lambda l, e: (0, 0)),                # b4
    ]
    out_spec = pl.BlockSpec((B_pad, T_pad), lambda l, e: (0, 0))

    flops = int(L * (4 * E_pad * N_pad * D_pad + 4 * N_pad * D_pad * H_pad)
                + 2 * B_pad * N_pad * D_pad
                + 2 * B_pad * D_pad * H_pad
                + 2 * B_pad * H_pad * T_pad)
    weight_bytes = sum(int(params[k].size) * params[k].dtype.itemsize
                       for k in ("w1", "b1", "w2", "b2", "w3", "b3", "w4", "b4"))
    bytes_accessed = int(L * (E_pad * D_pad * 4 + 2 * E_pad * 4)       # edge data per layer
                         + N_pad * D_pad * 4 + N_pad * 4 + N_pad * 4
                         + weight_bytes + B_pad * T_pad * 4)

    out = pl.pallas_call(
        gine_fused_kernel,
        out_shape=jax.ShapeDtypeStruct((B_pad, T_pad), jnp.float32),
        grid=(L, n_etiles),
        in_specs=in_specs,
        out_specs=out_spec,
        scratch_shapes=[
            pltpu.VMEM((N_pad, D_pad), jnp.float32),    # h (resident across layers)
            pltpu.VMEM((N_pad, D_pad), jnp.bfloat16),   # h, bf16 copy for MXU operands
            pltpu.VMEM((N_pad, D_pad), jnp.float32),    # per-layer aggregation accum
        ],
        compiler_params=pltpu.CompilerParams(
            dimension_semantics=("arbitrary", "arbitrary"),
            vmem_limit_bytes=48 * 1024 * 1024),
        cost_estimate=pl.CostEstimate(flops=flops, transcendentals=0,
                                      bytes_accessed=bytes_accessed),
    )(src, dst, bat, node_mask, h0, ea,
      params["w1"], params["b1"], params["w2"], params["b2"],
      params["w3"], params["b3"], params["w4"], params["b4"])

    return out[:num_graphs, :num_tasks]


def ginenet_v2_forward(x, edge_index, edge_attr, batch, params,
                       num_graphs, num_tasks):
    out = _forward_impl(x, edge_index, edge_attr, batch, params,
                        num_graphs=num_graphs, num_tasks=num_tasks)
    thetas = [None] * int(params["w1"].shape[0])   # ReLUActivation returns no theta
    return out, thetas


# ----------------------------------------------------------------------------
# Main
# ----------------------------------------------------------------------------

if __name__ == "__main__":
    emb_dim = 32
    num_layers = 3
    num_tasks = 1
    N = 16          # nodes
    E = 32          # edges
    B = 2           # graphs

    key = jax.random.PRNGKey(0)
    k_par, k_x, k_ei, k_ea = jax.random.split(key, 4)

    emb_table, layer_params, head_params = init_params(
        k_par, emb_dim, num_layers, num_tasks)
    params = prepare_params(emb_table, layer_params, head_params, num_tasks)

    # inputs
    x = jax.random.randint(k_x, (N, 1), 0, 21, dtype=jnp.int32)       # node token ids
    edge_index = jax.random.randint(k_ei, (2, E), 0, N, dtype=jnp.int32)
    edge_attr = jax.random.normal(k_ea, (E, emb_dim), jnp.float32)    # edge features [E, D]
    batch = jnp.concatenate([jnp.zeros(N // 2, jnp.int32),
                             jnp.ones(N - N // 2, jnp.int32)])        # graph assignment

    out, thetas = ginenet_v2_forward(
        x, edge_index, edge_attr, batch, params,
        num_graphs=B, num_tasks=num_tasks)

    out = jax.block_until_ready(out)
    assert out.shape == (B, num_tasks)
    assert len(thetas) == num_layers
    print("KERNEL_OK")
</pallas_src>

<mosaic_0001>
module attributes {stable_mosaic.version = 11 : i64} {
  func.func @gine_fused_kernel(%arg0: i32, %arg1: i32, %arg2: memref<32x1xi32, #tpu.memory_space<vmem>>, %arg3: memref<1x32xi32, #tpu.memory_space<vmem>>, %arg4: memref<1x16xi32, #tpu.memory_space<vmem>>, %arg5: memref<16x1xf32, #tpu.memory_space<vmem>>, %arg6: memref<16x128xf32, #tpu.memory_space<vmem>>, %arg7: memref<32x128xf32, #tpu.memory_space<vmem>>, %arg8: memref<1x128x128xbf16, #tpu.memory_space<vmem>>, %arg9: memref<1x1x128xf32, #tpu.memory_space<vmem>>, %arg10: memref<1x128x128xbf16, #tpu.memory_space<vmem>>, %arg11: memref<1x1x128xf32, #tpu.memory_space<vmem>>, %arg12: memref<128x128xbf16, #tpu.memory_space<vmem>>, %arg13: memref<1x128xf32, #tpu.memory_space<vmem>>, %arg14: memref<128x128xbf16, #tpu.memory_space<vmem>>, %arg15: memref<1x128xf32, #tpu.memory_space<vmem>>, %arg16: memref<8x128xf32, #tpu.memory_space<vmem>>, %arg17: memref<16x128xf32, #tpu.memory_space<vmem>>, %arg18: memref<16x128xbf16, #tpu.memory_space<vmem>>, %arg19: memref<16x128xf32, #tpu.memory_space<vmem>>) attributes {dimension_semantics = [#tpu.dimension_semantics<arbitrary>, #tpu.dimension_semantics<arbitrary>], iteration_bounds = array<i64: 3, 1>, scalar_prefetch = 0 : i64, scratch_operands = 3 : i64, tpu.core_type = #tpu.core_type<tc>, window_params = [{transform_indices = @transform_0, window_bounds = array<i64: 32, 1>}, {transform_indices = @transform_1, window_bounds = array<i64: 1, 32>}, {pipeline_mode = #tpu.pipeline_mode<synchronous>, transform_indices = @transform_2, window_bounds = array<i64: 1, 16>}, {pipeline_mode = #tpu.pipeline_mode<synchronous>, transform_indices = @transform_3, window_bounds = array<i64: 16, 1>}, {pipeline_mode = #tpu.pipeline_mode<synchronous>, transform_indices = @transform_4, window_bounds = array<i64: 16, 128>}, {transform_indices = @transform_5, window_bounds = array<i64: 32, 128>}, {transform_indices = @transform_6, window_bounds = array<i64: 1, 128, 128>}, {transform_indices = @transform_7, window_bounds = array<i64: 1, 1, 128>}, {transform_indices = @transform_8, window_bounds = array<i64: 1, 128, 128>}, {transform_indices = @transform_9, window_bounds = array<i64: 1, 1, 128>}, {pipeline_mode = #tpu.pipeline_mode<synchronous>, transform_indices = @transform_10, window_bounds = array<i64: 128, 128>}, {pipeline_mode = #tpu.pipeline_mode<synchronous>, transform_indices = @transform_11, window_bounds = array<i64: 1, 128>}, {pipeline_mode = #tpu.pipeline_mode<synchronous>, transform_indices = @transform_12, window_bounds = array<i64: 128, 128>}, {pipeline_mode = #tpu.pipeline_mode<synchronous>, transform_indices = @transform_13, window_bounds = array<i64: 1, 128>}, {pipeline_mode = #tpu.pipeline_mode<synchronous>, transform_indices = @transform_14, window_bounds = array<i64: 8, 128>}]} {
    %c0_i32 = arith.constant 0 : i32
    %0 = arith.cmpi eq, %arg0, %c0_i32 : i32
    %c0_i32_0 = arith.constant 0 : i32
    %1 = arith.cmpi eq, %arg1, %c0_i32_0 : i32
    %2 = arith.andi %0, %1 : i1
    %3 = arith.extui %2 : i1 to i32
    %c0_i32_1 = arith.constant 0 : i32
    %4 = arith.cmpi ne, %3, %c0_i32_1 : i32
    scf.if %4 {
      %c0_21 = arith.constant 0 : index
      %c0_22 = arith.constant 0 : index
      %41 = vector.load %arg6[%c0_21, %c0_22] : memref<16x128xf32, #tpu.memory_space<vmem>>, vector<16x128xf32>
      %c0_23 = arith.constant 0 : index
      %c0_24 = arith.constant 0 : index
      %42 = vector.load %arg17[%c0_23, %c0_24] : memref<16x128xf32, #tpu.memory_space<vmem>>, vector<16x128xf32>
      tpu.vector_store %arg17[%c0_23, %c0_24], %41 {strides = array<i32>} : memref<16x128xf32, #tpu.memory_space<vmem>>, vector<16x128xf32>,
      %43 = arith.truncf %41 : vector<16x128xf32> to vector<16x128xbf16>
      %c0_25 = arith.constant 0 : index
      %c0_26 = arith.constant 0 : index
      %44 = vector.load %arg18[%c0_25, %c0_26] : memref<16x128xbf16, #tpu.memory_space<vmem>>, vector<16x128xbf16>
      tpu.vector_store %arg18[%c0_25, %c0_26], %43 {strides = array<i32>} : memref<16x128xbf16, #tpu.memory_space<vmem>>, vector<16x128xbf16>,
    } else {
    }
    %c0_i32_2 = arith.constant 0 : i32
    %5 = arith.cmpi eq, %arg1, %c0_i32_2 : i32
    %6 = arith.extui %5 : i1 to i32
    %c0_i32_3 = arith.constant 0 : i32
    %7 = arith.cmpi ne, %6, %c0_i32_3 : i32
    scf.if %7 {
      %cst_21 = arith.constant 0.000000e+00 : f32
      %41 = vector.broadcast %cst_21 : f32 to vector<16x128xf32>
      %c0_22 = arith.constant 0 : index
      %c0_23 = arith.constant 0 : index
      %42 = vector.load %arg19[%c0_22, %c0_23] : memref<16x128xf32, #tpu.memory_space<vmem>>, vector<16x128xf32>
      tpu.vector_store %arg19[%c0_22, %c0_23], %41 {strides = array<i32>} : memref<16x128xf32, #tpu.memory_space<vmem>>, vector<16x128xf32>,
    } else {
    }
    %8 = tpu.iota {dimensions = array<i32: 1>} : vector<32x16xi32>
    %c0 = arith.constant 0 : index
    %c0_4 = arith.constant 0 : index
    %9 = vector.load %arg2[%c0, %c0_4] : memref<32x1xi32, #tpu.memory_space<vmem>>, vector<32x1xi32>
    %10 = vector.broadcast %9 : vector<32x1xi32> to vector<32x16xi32>
    %11 = arith.cmpi eq, %10, %8 : vector<32x16xi32>
    %12 = arith.extui %11 : vector<32x16xi1> to vector<32x16xi32>
    %13 = arith.sitofp %12 : vector<32x16xi32> to vector<32x16xf32>
    %14 = arith.truncf %13 : vector<32x16xf32> to vector<32x16xbf16>
    %15 = tpu.iota {dimensions = array<i32: 0>} : vector<16x32xi32>
    %c0_5 = arith.constant 0 : index
    %c0_6 = arith.constant 0 : index
    %16 = vector.load %arg3[%c0_5, %c0_6] : memref<1x32xi32, #tpu.memory_space<vmem>>, vector<1x32xi32>
    %17 = vector.broadcast %16 : vector<1x32xi32> to vector<16x32xi32>
    %18 = arith.cmpi eq, %15, %17 : vector<16x32xi32>
    %19 = arith.extui %18 : vector<16x32xi1> to vector<16x32xi32>
    %20 = arith.sitofp %19 : vector<16x32xi32> to vector<16x32xf32>
    %21 = arith.truncf %20 : vector<16x32xf32> to vector<16x32xbf16>
    %c0_7 = arith.constant 0 : index
    %c0_8 = arith.constant 0 : index
    %22 = vector.load %arg18[%c0_7, %c0_8] : memref<16x128xbf16, #tpu.memory_space<vmem>>, vector<16x128xbf16>
    %cst = arith.constant dense<0.000000e+00> : vector<32x128xf32>
    %23 = tpu.matmul %14, %22, %cst {dimension_numbers = #tpu.dot_dimension_numbers<[1], [0], [0], [1], [0, 0, 1, 1], [], []>} : vector<32x16xbf16>, vector<16x128xbf16>, vector<32x128xf32> -> vector<32x128xf32>
    %c0_9 = arith.constant 0 : index
    %c0_10 = arith.constant 0 : index
    %24 = vector.load %arg7[%c0_9, %c0_10] : memref<32x128xf32, #tpu.memory_space<vmem>>, vector<32x128xf32>
    %25 = arith.addf %23, %24 : vector<32x128xf32>
    %cst_11 = arith.constant 0.000000e+00 : f32
    %26 = vector.broadcast %cst_11 : f32 to vector<32x128xf32>
    %27 = arith.maximumf %25, %26 : vector<32x128xf32>
    %c0_12 = arith.constant 0 : index
    %c0_13 = arith.constant 0 : index
    %28 = vector.load %arg19[%c0_12, %c0_13] : memref<16x128xf32, #tpu.memory_space<vmem>>, vector<16x128xf32>
    %29 = arith.truncf %27 : vector<32x128xf32> to vector<32x128xbf16>
    %cst_14 = arith.constant dense<0.000000e+00> : vector<16x128xf32>
    %30 = tpu.matmul %21, %29, %cst_14 {dimension_numbers = #tpu.dot_dimension_numbers<[1], [0], [0], [1], [0, 0, 1, 1], [], []>} : vector<16x32xbf16>, vector<32x128xbf16>, vector<16x128xf32> -> vector<16x128xf32>
    %31 = arith.addf %28, %30 : vector<16x128xf32>
    %c0_15 = arith.constant 0 : index
    %c0_16 = arith.constant 0 : index
    %32 = vector.load %arg19[%c0_15, %c0_16] : memref<16x128xf32, #tpu.memory_space<vmem>>, vector<16x128xf32>
    tpu.vector_store %arg19[%c0_15, %c0_16], %31 {strides = array<i32>} : memref<16x128xf32, #tpu.memory_space<vmem>>, vector<16x128xf32>,
    %c0_i32_17 = arith.constant 0 : i32
    %33 = arith.cmpi eq, %arg1, %c0_i32_17 : i32
    %34 = arith.extui %33 : i1 to i32
    %c0_i32_18 = arith.constant 0 : i32
    %35 = arith.cmpi ne, %34, %c0_i32_18 : i32
    scf.if %35 {
      %c0_21 = arith.constant 0 : index
      %c0_22 = arith.constant 0 : index
      %41 = vector.load %arg17[%c0_21, %c0_22] : memref<16x128xf32, #tpu.memory_space<vmem>>, vector<16x128xf32>
      %c0_23 = arith.constant 0 : index
      %c0_24 = arith.constant 0 : index
      %42 = vector.load %arg19[%c0_23, %c0_24] : memref<16x128xf32, #tpu.memory_space<vmem>>, vector<16x128xf32>
      %43 = arith.addf %41, %42 : vector<16x128xf32>
      %44 = arith.truncf %43 : vector<16x128xf32> to vector<16x128xbf16>
      %c0_25 = arith.constant 0 : index
      %c0_26 = arith.constant 0 : index
      %c0_27 = arith.constant 0 : index
      %45 = vector.load %arg8[%c0_25, %c0_26, %c0_27] : memref<1x128x128xbf16, #tpu.memory_space<vmem>>, vector<1x128x128xbf16>
      %46 = vector.shape_cast %45 : vector<1x128x128xbf16> to vector<128x128xbf16>
      %cst_28 = arith.constant dense<0.000000e+00> : vector<16x128xf32>
      %47 = tpu.matmul %44, %46, %cst_28 {dimension_numbers = #tpu.dot_dimension_numbers<[1], [0], [0], [1], [0, 0, 1, 1], [], []>} : vector<16x128xbf16>, vector<128x128xbf16>, vector<16x128xf32> -> vector<16x128xf32>
      %c0_29 = arith.constant 0 : index
      %c0_30 = arith.constant 0 : index
      %c0_31 = arith.constant 0 : index
      %48 = vector.load %arg9[%c0_29, %c0_30, %c0_31] : memref<1x1x128xf32, #tpu.memory_space<vmem>>, vector<1x1x128xf32>
      %49 = vector.shape_cast %48 : vector<1x1x128xf32> to vector<1x128xf32>
      %50 = vector.broadcast %49 : vector<1x128xf32> to vector<16x128xf32>
      %51 = arith.addf %47, %50 : vector<16x128xf32>
      %cst_32 = arith.constant 0.000000e+00 : f32
      %52 = vector.broadcast %cst_32 : f32 to vector<16x128xf32>
      %53 = arith.maximumf %51, %52 : vector<16x128xf32>
      %54 = arith.truncf %53 : vector<16x128xf32> to vector<16x128xbf16>
      %c0_33 = arith.constant 0 : index
      %c0_34 = arith.constant 0 : index
      %c0_35 = arith.constant 0 : index
      %55 = vector.load %arg10[%c0_33, %c0_34, %c0_35] : memref<1x128x128xbf16, #tpu.memory_space<vmem>>, vector<1x128x128xbf16>
      %56 = vector.shape_cast %55 : vector<1x128x128xbf16> to vector<128x128xbf16>
      %cst_36 = arith.constant dense<0.000000e+00> : vector<16x128xf32>
      %57 = tpu.matmul %54, %56, %cst_36 {dimension_numbers = #tpu.dot_dimension_numbers<[1], [0], [0], [1], [0, 0, 1, 1], [], []>} : vector<16x128xbf16>, vector<128x128xbf16>, vector<16x128xf32> -> vector<16x128xf32>
      %c0_37 = arith.constant 0 : index
      %c0_38 = arith.constant 0 : index
      %c0_39 = arith.constant 0 : index
      %58 = vector.load %arg11[%c0_37, %c0_38, %c0_39] : memref<1x1x128xf32, #tpu.memory_space<vmem>>, vector<1x1x128xf32>
      %59 = vector.shape_cast %58 : vector<1x1x128xf32> to vector<1x128xf32>
      %60 = vector.broadcast %59 : vector<1x128xf32> to vector<16x128xf32>
      %61 = arith.addf %57, %60 : vector<16x128xf32>
      %cst_40 = arith.constant 0.000000e+00 : f32
      %62 = vector.broadcast %cst_40 : f32 to vector<16x128xf32>
      %63 = arith.maximumf %61, %62 : vector<16x128xf32>
      %c0_41 = arith.constant 0 : index
      %c0_42 = arith.constant 0 : index
      %64 = vector.load %arg5[%c0_41, %c0_42] : memref<16x1xf32, #tpu.memory_space<vmem>>, vector<16x1xf32>
      %65 = vector.broadcast %64 : vector<16x1xf32> to vector<16x128xf32>
      %66 = arith.mulf %63, %65 : vector<16x128xf32>
      %c0_43 = arith.constant 0 : index
      %c0_44 = arith.constant 0 : index
      %67 = vector.load %arg17[%c0_43, %c0_44] : memref<16x128xf32, #tpu.memory_space<vmem>>, vector<16x128xf32>
      %68 = arith.addf %66, %67 : vector<16x128xf32>
      %c0_45 = arith.constant 0 : index
      %c0_46 = arith.constant 0 : index
      %69 = vector.load %arg17[%c0_45, %c0_46] : memref<16x128xf32, #tpu.memory_space<vmem>>, vector<16x128xf32>
      tpu.vector_store %arg17[%c0_45, %c0_46], %68 {strides = array<i32>} : memref<16x128xf32, #tpu.memory_space<vmem>>, vector<16x128xf32>,
      %70 = arith.truncf %68 : vector<16x128xf32> to vector<16x128xbf16>
      %c0_47 = arith.constant 0 : index
      %c0_48 = arith.constant 0 : index
      %71 = vector.load %arg18[%c0_47, %c0_48] : memref<16x128xbf16, #tpu.memory_space<vmem>>, vector<16x128xbf16>
      tpu.vector_store %arg18[%c0_47, %c0_48], %70 {strides = array<i32>} : memref<16x128xbf16, #tpu.memory_space<vmem>>, vector<16x128xbf16>,
    } else {
    }
    %c0_i32_19 = arith.constant 0 : i32
    %36 = arith.cmpi eq, %arg1, %c0_i32_19 : i32
    %c2_i32 = arith.constant 2 : i32
    %37 = arith.cmpi eq, %arg0, %c2_i32 : i32
    %38 = arith.andi %36, %37 : i1
    %39 = arith.extui %38 : i1 to i32
    %c0_i32_20 = arith.constant 0 : i32
    %40 = arith.cmpi ne, %39, %c0_i32_20 : i32
    scf.if %40 {
      %41 = tpu.iota {dimensions = array<i32: 0>} : vector<8x16xi32>
      %c0_21 = arith.constant 0 : index
      %c0_22 = arith.constant 0 : index
      %42 = vector.load %arg4[%c0_21, %c0_22] : memref<1x16xi32, #tpu.memory_space<vmem>>, vector<1x16xi32>
      %43 = vector.broadcast %42 : vector<1x16xi32> to vector<8x16xi32>
      %44 = arith.cmpi eq, %41, %43 : vector<8x16xi32>
      %45 = arith.extui %44 : vector<8x16xi1> to vector<8x16xi32>
      %46 = arith.sitofp %45 : vector<8x16xi32> to vector<8x16xf32>
      %47 = arith.truncf %46 : vector<8x16xf32> to vector<8x16xbf16>
      %c0_23 = arith.constant 0 : index
      %c0_24 = arith.constant 0 : index
      %48 = vector.load %arg18[%c0_23, %c0_24] : memref<16x128xbf16, #tpu.memory_space<vmem>>, vector<16x128xbf16>
      %cst_25 = arith.constant dense<0.000000e+00> : vector<8x128xf32>
      %49 = tpu.matmul %47, %48, %cst_25 {dimension_numbers = #tpu.dot_dimension_numbers<[1], [0], [0], [1], [0, 0, 1, 1], [], []>} : vector<8x16xbf16>, vector<16x128xbf16>, vector<8x128xf32> -> vector<8x128xf32>
      %50 = arith.truncf %49 : vector<8x128xf32> to vector<8x128xbf16>
      %c0_26 = arith.constant 0 : index
      %c0_27 = arith.constant 0 : index
      %51 = vector.load %arg12[%c0_26, %c0_27] : memref<128x128xbf16, #tpu.memory_space<vmem>>, vector<128x128xbf16>
      %cst_28 = arith.constant dense<0.000000e+00> : vector<8x128xf32>
      %52 = tpu.matmul %50, %51, %cst_28 {dimension_numbers = #tpu.dot_dimension_numbers<[1], [0], [0], [1], [0, 0, 1, 1], [], []>} : vector<8x128xbf16>, vector<128x128xbf16>, vector<8x128xf32> -> vector<8x128xf32>
      %c0_29 = arith.constant 0 : index
      %c0_30 = arith.constant 0 : index
      %53 = vector.load %arg13[%c0_29, %c0_30] : memref<1x128xf32, #tpu.memory_space<vmem>>, vector<1x128xf32>
      %54 = vector.broadcast %53 : vector<1x128xf32> to vector<8x128xf32>
      %55 = arith.addf %52, %54 : vector<8x128xf32>
      %cst_31 = arith.constant 0.000000e+00 : f32
      %56 = vector.broadcast %cst_31 : f32 to vector<8x128xf32>
      %57 = arith.maximumf %55, %56 : vector<8x128xf32>
      %58 = arith.truncf %57 : vector<8x128xf32> to vector<8x128xbf16>
      %c0_32 = arith.constant 0 : index
      %c0_33 = arith.constant 0 : index
      %59 = vector.load %arg14[%c0_32, %c0_33] : memref<128x128xbf16, #tpu.memory_space<vmem>>, vector<128x128xbf16>
      %cst_34 = arith.constant dense<0.000000e+00> : vector<8x128xf32>
      %60 = tpu.matmul %58, %59, %cst_34 {dimension_numbers = #tpu.dot_dimension_numbers<[1], [0], [0], [1], [0, 0, 1, 1], [], []>} : vector<8x128xbf16>, vector<128x128xbf16>, vector<8x128xf32> -> vector<8x128xf32>
      %c0_35 = arith.constant 0 : index
      %c0_36 = arith.constant 0 : index
      %61 = vector.load %arg15[%c0_35, %c0_36] : memref<1x128xf32, #tpu.memory_space<vmem>>, vector<1x128xf32>
      %62 = vector.broadcast %61 : vector<1x128xf32> to vector<8x128xf32>
      %63 = arith.addf %60, %62 : vector<8x128xf32>
      %c0_37 = arith.constant 0 : index
      %c0_38 = arith.constant 0 : index
      %64 = vector.load %arg16[%c0_37, %c0_38] : memref<8x128xf32, #tpu.memory_space<vmem>>, vector<8x128xf32>
      tpu.vector_store %arg16[%c0_37, %c0_38], %63 {strides = array<i32>} : memref<8x128xf32, #tpu.memory_space<vmem>>, vector<8x128xf32>,
    } else {
    }
    return
  }
  func.func @transform_0(%arg0: i32, %arg1: i32) -> (i32, i32) {
    %c0_i32 = arith.constant 0 : i32
    %c0_i32_0 = arith.constant 0 : i32
    return %arg1, %c0_i32 : i32, i32
  }
  func.func @transform_1(%arg0: i32, %arg1: i32) -> (i32, i32) {
    %c0_i32 = arith.constant 0 : i32
    %c0_i32_0 = arith.constant 0 : i32
    return %c0_i32, %arg1 : i32, i32
  }
  func.func @transform_2(%arg0: i32, %arg1: i32) -> (i32, i32) {
    %c0_i32 = arith.constant 0 : i32
    %c0_i32_0 = arith.constant 0 : i32
    %c0_i32_1 = arith.constant 0 : i32
    return %c0_i32, %c0_i32_0 : i32, i32
  }
  func.func @transform_3(%arg0: i32, %arg1: i32) -> (i32, i32) {
    %c0_i32 = arith.constant 0 : i32
    %c0_i32_0 = arith.constant 0 : i32
    %c0_i32_1 = arith.constant 0 : i32
    return %c0_i32, %c0_i32_0 : i32, i32
  }
  func.func @transform_4(%arg0: i32, %arg1: i32) -> (i32, i32) {
    %c0_i32 = arith.constant 0 : i32
    %c0_i32_0 = arith.constant 0 : i32
    %c0_i32_1 = arith.constant 0 : i32
    return %c0_i32, %c0_i32_0 : i32, i32
  }
  func.func @transform_5(%arg0: i32, %arg1: i32) -> (i32, i32) {
    %c0_i32 = arith.constant 0 : i32
    %c0_i32_0 = arith.constant 0 : i32
    return %arg1, %c0_i32 : i32, i32
  }
  func.func @transform_6(%arg0: i32, %arg1: i32) -> (i32, i32, i32) {
    %c0_i32 = arith.constant 0 : i32
    %c0_i32_0 = arith.constant 0 : i32
    %c0_i32_1 = arith.constant 0 : i32
    return %arg0, %c0_i32, %c0_i32_0 : i32, i32, i32
  }
  func.func @transform_7(%arg0: i32, %arg1: i32) -> (i32, i32, i32) {
    %c0_i32 = arith.constant 0 : i32
    %c0_i32_0 = arith.constant 0 : i32
    %c0_i32_1 = arith.constant 0 : i32
    return %arg0, %c0_i32, %c0_i32_0 : i32, i32, i32
  }
  func.func @transform_8(%arg0: i32, %arg1: i32) -> (i32, i32, i32) {
    %c0_i32 = arith.constant 0 : i32
    %c0_i32_0 = arith.constant 0 : i32
    %c0_i32_1 = arith.constant 0 : i32
    return %arg0, %c0_i32, %c0_i32_0 : i32, i32, i32
  }
  func.func @transform_9(%arg0: i32, %arg1: i32) -> (i32, i32, i32) {
    %c0_i32 = arith.constant 0 : i32
    %c0_i32_0 = arith.constant 0 : i32
    %c0_i32_1 = arith.constant 0 : i32
    return %arg0, %c0_i32, %c0_i32_0 : i32, i32, i32
  }
  func.func @transform_10(%arg0: i32, %arg1: i32) -> (i32, i32) {
    %c0_i32 = arith.constant 0 : i32
    %c0_i32_0 = arith.constant 0 : i32
    %c0_i32_1 = arith.constant 0 : i32
    return %c0_i32, %c0_i32_0 : i32, i32
  }
  func.func @transform_11(%arg0: i32, %arg1: i32) -> (i32, i32) {
    %c0_i32 = arith.constant 0 : i32
    %c0_i32_0 = arith.constant 0 : i32
    %c0_i32_1 = arith.constant 0 : i32
    return %c0_i32, %c0_i32_0 : i32, i32
  }
  func.func @transform_12(%arg0: i32, %arg1: i32) -> (i32, i32) {
    %c0_i32 = arith.constant 0 : i32
    %c0_i32_0 = arith.constant 0 : i32
    %c0_i32_1 = arith.constant 0 : i32
    return %c0_i32, %c0_i32_0 : i32, i32
  }
  func.func @transform_13(%arg0: i32, %arg1: i32) -> (i32, i32) {
    %c0_i32 = arith.constant 0 : i32
    %c0_i32_0 = arith.constant 0 : i32
    %c0_i32_1 = arith.constant 0 : i32
    return %c0_i32, %c0_i32_0 : i32, i32
  }
  func.func @transform_14(%arg0: i32, %arg1: i32) -> (i32, i32) {
    %c0_i32 = arith.constant 0 : i32
    %c0_i32_0 = arith.constant 0 : i32
    %c0_i32_1 = arith.constant 0 : i32
    return %c0_i32, %c0_i32_0 : i32, i32
  }
}

</mosaic_0001>

<llo_original>
// kernel: _forward_impl.1
$region0: #{_forward_impl.1}
  #allocation0 [shape = 'u32[]', space=smem, size = 0x4, offset = 0x4, fixed_abs, tag = 'smem constant byte address 0x4 - core index']
  #allocation1 [shape = 'u32[144,128]{1,0:T(1,128)}', space=vmem, size = 0x12000, scoped, tag = 'internal scratch']
  #allocation2 [shape = 'f32[16,128]{1,0:T(8,128)}', space=vmem, size = 0x2000, scoped, tag = 'scratch operand']
  #allocation3 [shape = 'bf16[16,128]{1,0:T(8,128)(2,1)}', space=vmem, size = 0x1000, scoped, tag = 'scratch operand']
  #allocation4 [shape = 'f32[16,128]{1,0:T(8,128)}', space=vmem, size = 0x2000, scoped, tag = 'scratch operand']
  %s0 = inlined_call_operand.vmem [shape: s32[32,1], index: 0, kind: input, shape index: {}]
  %s1 = inlined_call_operand.vmem [shape: s32[1,32], index: 1, kind: input, shape index: {}]
  %s2 = inlined_call_operand.vmem [shape: s32[1,16], index: 2, kind: input, shape index: {}]
  %s3 = inlined_call_operand.vmem [shape: f32[16,1], index: 3, kind: input, shape index: {}]
  %s4 = inlined_call_operand.vmem [shape: f32[16,128], index: 4, kind: input, shape index: {}]
  %s5 = inlined_call_operand.vmem [shape: f32[32,128], index: 5, kind: input, shape index: {}]
  %s6 = inlined_call_operand.vmem [shape: bf16[3,128,128], index: 6, kind: input, shape index: {}]
  %s7 = inlined_call_operand.vmem [shape: f32[3,1,128], index: 7, kind: input, shape index: {}]
  %s8 = inlined_call_operand.hbm [shape: bf16[3,128,128], index: 8, kind: input, shape index: {}]
  %s9 = inlined_call_operand.vmem [shape: f32[3,1,128], index: 9, kind: input, shape index: {}]
  %s10 = inlined_call_operand.vmem [shape: bf16[128,128], index: 10, kind: input, shape index: {}]
  %s11 = inlined_call_operand.vmem [shape: f32[1,128], index: 11, kind: input, shape index: {}]
  %s12 = inlined_call_operand.vmem [shape: bf16[128,128], index: 12, kind: input, shape index: {}]
  %s13 = inlined_call_operand.vmem [shape: f32[1,128], index: 13, kind: input, shape index: {}]
  %s14 = inlined_call_operand.vmem [shape: f32[8,128], index: 14, kind: output, shape index: {}]
  %s15 = sld [smem:[#allocation0]]
  $region109: #{_forward_impl.1} parent=0
    _
  %s17 = ssub.s32 1, %s15
  %s18 = scalar_select 0, %s17, %s15
  $region1: #{_forward_impl.1} parent=0
    #allocation5 [shape = 'u8[65536]{0}', space=vmem, size = 0x10000, scoped, tag = 'input window, operand 8']
    #allocation6 [shape = 's32[2]{0}', space=sflag, size = 0x8, scoped, tag = 'scoped memory for _forward_impl.1']
    %19 = vsyncpa [#allocation6], 0
    %s20 = scalar_lea.sflag [#allocation6], 1
    %21 = vsyncpa %s20, 0
    loop: start=0, step=1, limit=5
    $region2: #{_forward_impl.1} parent=1 // loop_pre_header
      _
    $region3: #{_forward_impl.1} parent=1 // loop_header
      %s23 = sphi 0, %s27
      %p24 = scmp.ge.s32.totalorder %s23, 5
      %s30 = sphi 0, %s42
      %s31 = sphi 0, %s38
      %s32 = sphi 0, %s30
      %s33 = sphi 0, %s31
      %s34 = sphi 0, %s32
      %s35 = sphi 0, %s33
      %s45 = sphi 0, %s47
      %s48 = sphi 0, %s45
      %s49 = sphi 0, %s48
      %s65 = sphi 0, %s49
      %s71 = sphi 0, %s73
      %s74 = sphi 0, %s71
      %s75 = sphi 0, %s74
      %s91 = sphi 0, %s75
      %s95 = sphi 0, %s95
      %s97 = sphi 0, %s95
      %s98 = sphi 0, %s97
      %s112 = sphi 0, %s98
      %s116 = sphi 0, %s116
      %s118 = sphi 0, %s116
      %s119 = sphi 0, %s118
      %s133 = sphi 0, %s119
      %s137 = sphi 0, %s137
      %s139 = sphi 0, %s137
      %s140 = sphi 0, %s139
      %s154 = sphi 0, %s140
      %s160 = sphi 0, %s162
      %s163 = sphi 0, %s160
      %s164 = sphi 0, %s163
      %s180 = sphi 0, %s164
      %s186 = sphi 0, %s188
      %s189 = sphi 0, %s186
      %s190 = sphi 0, %s189
      %s206 = sphi 0, %s190
      %s212 = sphi 0, %s214
      %s215 = sphi 0, %s212
      %s216 = sphi 0, %s215
      %s232 = sphi 0, %s216
      %s238 = sphi 0, %s240
      %s241 = sphi 0, %s238
      %s242 = sphi 0, %s241
      %s258 = sphi 0, %s242
      %s264 = sphi 0, %s266
      %s267 = sphi 0, %s264
      %s268 = sphi 0, %s267
      %s284 = sphi 0, %s268
      %s288 = sphi 0, %s288
      %s290 = sphi 0, %s288
      %s291 = sphi 0, %s290
      %s305 = sphi 0, %s291
      %s309 = sphi 0, %s309
      %s311 = sphi 0, %s309
      %s312 = sphi 0, %s311
      %s326 = sphi 0, %s312
      %s330 = sphi 0, %s330
      %s332 = sphi 0, %s330
      %s333 = sphi 0, %s332
      %s347 = sphi 0, %s333
      %s351 = sphi 0, %s351
      %s353 = sphi 0, %s351
      %s354 = sphi 0, %s353
      %s368 = sphi 0, %s354
      %s372 = sphi 0, %s372
      %s374 = sphi 0, %s372
      %s375 = sphi 0, %s374
      %s389 = sphi 0, %s375
    $region4: #{_forward_impl.1} parent=1 // loop_header_branch
      %26 = sbr.rel (%p24) target = $region8
    $region5: #{_forward_impl.1} parent=1 // loop_body
      %s28 = ssub.s32 %s23, 1
      %s29 = ssub.s32 %s23, 2
      %s36 = sadd.s32 1, %s31
      %p37 = scmp.ge.s32.totalorder %s36, 1
      %s38 = scalar_select %p37, 0, %s36
      %s39 = sadd.s32 1, %s30
      %s40 = scalar_select %p37, %s39, %s30
      %p41 = scmp.ge.s32.totalorder %s40, 3
      %s42 = scalar_select %p41, 0, %s40
      %s43 = ssub.s32 %s31, %s38
      %p44 = scmp.eq.s32.totalorder %s43, 0
      %s46 = sadd.s32 %s45, 1
      %s47 = scalar_select %p44, %s45, %s46
      %p50 = pneg %p44
      %p51 = scmp.eq.s32.totalorder %s23, 2
      %p52 = por %p50, %p51
      %p53 = scmp.ne.s32.totalorder %s45, %s48
      %p54 = scmp.eq.s32.totalorder %s23, 0
      %p55 = por %p53, %p54
      %p56 = scmp.ne.s32.totalorder %s45, %s48
      %p57 = scmp.eq.s32.totalorder %s28, 2
      %p58 = por %p56, %p57
      %p59 = scmp.ne.s32.totalorder %s48, %s49
      %p60 = scmp.eq.s32.totalorder %s28, 0
      %p61 = por %p59, %p60
      %p62 = scmp.ne.s32.totalorder %s48, %s49
      %p63 = scmp.eq.s32.totalorder %s29, 2
      %p64 = por %p62, %p63
      %p66 = scmp.ne.s32.totalorder %s49, %s65
      %p67 = scmp.eq.s32.totalorder %s29, 0
      %p68 = por %p66, %p67
      %s69 = ssub.s32 %s31, %s38
      %p70 = scmp.eq.s32.totalorder %s69, 0
      %s72 = sadd.s32 %s71, 1
      %s73 = scalar_select %p70, %s71, %s72
      %p76 = pneg %p70
      %p77 = scmp.eq.s32.totalorder %s23, 2
      %p78 = por %p76, %p77
      %p79 = scmp.ne.s32.totalorder %s71, %s74
      %p80 = scmp.eq.s32.totalorder %s23, 0
      %p81 = por %p79, %p80
      %p82 = scmp.ne.s32.totalorder %s71, %s74
      %p83 = scmp.eq.s32.totalorder %s28, 2
      %p84 = por %p82, %p83
      %p85 = scmp.ne.s32.totalorder %s74, %s75
      %p86 = scmp.eq.s32.totalorder %s28, 0
      %p87 = por %p85, %p86
      %p88 = scmp.ne.s32.totalorder %s74, %s75
      %p89 = scmp.eq.s32.totalorder %s29, 2
      %p90 = por %p88, %p89
      %p92 = scmp.ne.s32.totalorder %s75, %s91
      %p93 = scmp.eq.s32.totalorder %s29, 0
      %p94 = por %p92, %p93
      %s96 = sadd.s32 %s95, 1
      %p99 = scmp.eq.s32.totalorder %s23, 2
      %p100 = scmp.ne.s32.totalorder %s95, %s97
      %p101 = scmp.eq.s32.totalorder %s23, 0
      %p102 = por %p100, %p101
      %p103 = scmp.ne.s32.totalorder %s95, %s97
      %p104 = scmp.eq.s32.totalorder %s28, 2
      %p105 = por %p103, %p104
      %p106 = scmp.ne.s32.totalorder %s97, %s98
      %p107 = scmp.eq.s32.totalorder %s28, 0
      %p108 = por %p106, %p107
      %p109 = scmp.ne.s32.totalorder %s97, %s98
      %p110 = scmp.eq.s32.totalorder %s29, 2
      %p111 = por %p109, %p110
      %p113 = scmp.ne.s32.totalorder %s98, %s112
      %p114 = scmp.eq.s32.totalorder %s29, 0
      %p115 = por %p113, %p114
      %s117 = sadd.s32 %s116, 1
      %p120 = scmp.eq.s32.totalorder %s23, 2
      %p121 = scmp.ne.s32.totalorder %s116, %s118
      %p122 = scmp.eq.s32.totalorder %s23, 0
      %p123 = por %p121, %p122
      %p124 = scmp.ne.s32.totalorder %s116, %s118
      %p125 = scmp.eq.s32.totalorder %s28, 2
      %p126 = por %p124, %p125
      %p127 = scmp.ne.s32.totalorder %s118, %s119
      %p128 = scmp.eq.s32.totalorder %s28, 0
      %p129 = por %p127, %p128
      %p130 = scmp.ne.s32.totalorder %s118, %s119
      %p131 = scmp.eq.s32.totalorder %s29, 2
      %p132 = por %p130, %p131
      %p134 = scmp.ne.s32.totalorder %s119, %s133
      %p135 = scmp.eq.s32.totalorder %s29, 0
      %p136 = por %p134, %p135
      %s138 = sadd.s32 %s137, 1
      %p141 = scmp.eq.s32.totalorder %s23, 2
      %p142 = scmp.ne.s32.totalorder %s137, %s139
      %p143 = scmp.eq.s32.totalorder %s23, 0
      %p144 = por %p142, %p143
      %p145 = scmp.ne.s32.totalorder %s137, %s139
      %p146 = scmp.eq.s32.totalorder %s28, 2
      %p147 = por %p145, %p146
      %p148 = scmp.ne.s32.totalorder %s139, %s140
      %p149 = scmp.eq.s32.totalorder %s28, 0
      %p150 = por %p148, %p149
      %p151 = scmp.ne.s32.totalorder %s139, %s140
      %p152 = scmp.eq.s32.totalorder %s29, 2
      %p153 = por %p151, %p152
      %p155 = scmp.ne.s32.totalorder %s140, %s154
      %p156 = scmp.eq.s32.totalorder %s29, 0
      %p157 = por %p155, %p156
      %s158 = ssub.s32 %s31, %s38
      %p159 = scmp.eq.s32.totalorder %s158, 0
      %s161 = sadd.s32 %s160, 1
      %s162 = scalar_select %p159, %s160, %s161
      %p165 = pneg %p159
      %p166 = scmp.eq.s32.totalorder %s23, 2
      %p167 = por %p165, %p166
      %p168 = scmp.ne.s32.totalorder %s160, %s163
      %p169 = scmp.eq.s32.totalorder %s23, 0
      %p170 = por %p168, %p169
      %p171 = scmp.ne.s32.totalorder %s160, %s163
      %p172 = scmp.eq.s32.totalorder %s28, 2
      %p173 = por %p171, %p172
      %p174 = scmp.ne.s32.totalorder %s163, %s164
      %p175 = scmp.eq.s32.totalorder %s28, 0
      %p176 = por %p174, %p175
      %p177 = scmp.ne.s32.totalorder %s163, %s164
      %p178 = scmp.eq.s32.totalorder %s29, 2
      %p179 = por %p177, %p178
      %p181 = scmp.ne.s32.totalorder %s164, %s180
      %p182 = scmp.eq.s32.totalorder %s29, 0
      %p183 = por %p181, %p182
      %s184 = ssub.s32 %s30, %s42
      %p185 = scmp.eq.s32.totalorder %s184, 0
      %s187 = sadd.s32 %s186, 1
      %s188 = scalar_select %p185, %s186, %s187
      %p191 = pneg %p185
      %p192 = scmp.eq.s32.totalorder %s23, 2
      %p193 = por %p191, %p192
      %p194 = scmp.ne.s32.totalorder %s186, %s189
      %p195 = scmp.eq.s32.totalorder %s23, 0
      %p196 = por %p194, %p195
      %p197 = scmp.ne.s32.totalorder %s186, %s189
      %p198 = scmp.eq.s32.totalorder %s28, 2
      %p199 = por %p197, %p198
      %p200 = scmp.ne.s32.totalorder %s189, %s190
      %p201 = scmp.eq.s32.totalorder %s28, 0
      %p202 = por %p200, %p201
      %p203 = scmp.ne.s32.totalorder %s189, %s190
      %p204 = scmp.eq.s32.totalorder %s29, 2
      %p205 = por %p203, %p204
      %p207 = scmp.ne.s32.totalorder %s190, %s206
      %p208 = scmp.eq.s32.totalorder %s29, 0
      %p209 = por %p207, %p208
      %s210 = ssub.s32 %s30, %s42
      %p211 = scmp.eq.s32.totalorder %s210, 0
      %s213 = sadd.s32 %s212, 1
      %s214 = scalar_select %p211, %s212, %s213
      %p217 = pneg %p211
      %p218 = scmp.eq.s32.totalorder %s23, 2
      %p219 = por %p217, %p218
      %p220 = scmp.ne.s32.totalorder %s212, %s215
      %p221 = scmp.eq.s32.totalorder %s23, 0
      %p222 = por %p220, %p221
      %p223 = scmp.ne.s32.totalorder %s212, %s215
      %p224 = scmp.eq.s32.totalorder %s28, 2
      %p225 = por %p223, %p224
      %p226 = scmp.ne.s32.totalorder %s215, %s216
      %p227 = scmp.eq.s32.totalorder %s28, 0
      %p228 = por %p226, %p227
      %p229 = scmp.ne.s32.totalorder %s215, %s216
      %p230 = scmp.eq.s32.totalorder %s29, 2
      %p231 = por %p229, %p230
      %p233 = scmp.ne.s32.totalorder %s216, %s232
      %p234 = scmp.eq.s32.totalorder %s29, 0
      %p235 = por %p233, %p234
      %s236 = ssub.s32 %s30, %s42
      %p237 = scmp.eq.s32.totalorder %s236, 0
      %s239 = sadd.s32 %s238, 1
      %s240 = scalar_select %p237, %s238, %s239
      %p243 = pneg %p237
      %p244 = scmp.eq.s32.totalorder %s23, 2
      %p245 = por %p243, %p244
      %p246 = scmp.ne.s32.totalorder %s238, %s241
      %p247 = scmp.eq.s32.totalorder %s23, 0
      %p248 = por %p246, %p247
      %p249 = scmp.ne.s32.totalorder %s238, %s241
      %p250 = scmp.eq.s32.totalorder %s28, 2
      %p251 = por %p249, %p250
      %p252 = scmp.ne.s32.totalorder %s241, %s242
      %p253 = scmp.eq.s32.totalorder %s28, 0
      %p254 = por %p252, %p253
      %p255 = scmp.ne.s32.totalorder %s241, %s242
      %p256 = scmp.eq.s32.totalorder %s29, 2
      %p257 = por %p255, %p256
      %p259 = scmp.ne.s32.totalorder %s242, %s258
      %p260 = scmp.eq.s32.totalorder %s29, 0
      %p261 = por %p259, %p260
      %s262 = ssub.s32 %s30, %s42
      %p263 = scmp.eq.s32.totalorder %s262, 0
      %s265 = sadd.s32 %s264, 1
      %s266 = scalar_select %p263, %s264, %s265
      %p269 = pneg %p263
      %p270 = scmp.eq.s32.totalorder %s23, 2
      %p271 = por %p269, %p270
      %p272 = scmp.ne.s32.totalorder %s264, %s267
      %p273 = scmp.eq.s32.totalorder %s23, 0
      %p274 = por %p272, %p273
      %p275 = scmp.ne.s32.totalorder %s264, %s267
      %p276 = scmp.eq.s32.totalorder %s28, 2
      %p277 = por %p275, %p276
      %p278 = scmp.ne.s32.totalorder %s267, %s268
      %p279 = scmp.eq.s32.totalorder %s28, 0
      %p280 = por %p278, %p279
      %p281 = scmp.ne.s32.totalorder %s267, %s268
      %p282 = scmp.eq.s32.totalorder %s29, 2
      %p283 = por %p281, %p282
      %p285 = scmp.ne.s32.totalorder %s268, %s284
      %p286 = scmp.eq.s32.totalorder %s29, 0
      %p287 = por %p285, %p286
      %s289 = sadd.s32 %s288, 1
      %p292 = scmp.eq.s32.totalorder %s23, 2
      %p293 = scmp.ne.s32.totalorder %s288, %s290
      %p294 = scmp.eq.s32.totalorder %s23, 0
      %p295 = por %p293, %p294
      %p296 = scmp.ne.s32.totalorder %s288, %s290
      %p297 = scmp.eq.s32.totalorder %s28, 2
      %p298 = por %p296, %p297
      %p299 = scmp.ne.s32.totalorder %s290, %s291
      %p300 = scmp.eq.s32.totalorder %s28, 0
      %p301 = por %p299, %p300
      %p302 = scmp.ne.s32.totalorder %s290, %s291
      %p303 = scmp.eq.s32.totalorder %s29, 2
      %p304 = por %p302, %p303
      %p306 = scmp.ne.s32.totalorder %s291, %s305
      %p307 = scmp.eq.s32.totalorder %s29, 0
      %p308 = por %p306, %p307
      %s310 = sadd.s32 %s309, 1
      %p313 = scmp.eq.s32.totalorder %s23, 2
      %p314 = scmp.ne.s32.totalorder %s309, %s311
      %p315 = scmp.eq.s32.totalorder %s23, 0
      %p316 = por %p314, %p315
      %p317 = scmp.ne.s32.totalorder %s309, %s311
      %p318 = scmp.eq.s32.totalorder %s28, 2
      %p319 = por %p317, %p318
      %p320 = scmp.ne.s32.totalorder %s311, %s312
      %p321 = scmp.eq.s32.totalorder %s28, 0
      %p322 = por %p320, %p321
      %p323 = scmp.ne.s32.totalorder %s311, %s312
      %p324 = scmp.eq.s32.totalorder %s29, 2
      %p325 = por %p323, %p324
      %p327 = scmp.ne.s32.totalorder %s312, %s326
      %p328 = scmp.eq.s32.totalorder %s29, 0
      %p329 = por %p327, %p328
      %s331 = sadd.s32 %s330, 1
      %p334 = scmp.eq.s32.totalorder %s23, 2
      %p335 = scmp.ne.s32.totalorder %s330, %s332
      %p336 = scmp.eq.s32.totalorder %s23, 0
      %p337 = por %p335, %p336
      %p338 = scmp.ne.s32.totalorder %s330, %s332
      %p339 = scmp.eq.s32.totalorder %s28, 2
      %p340 = por %p338, %p339
      %p341 = scmp.ne.s32.totalorder %s332, %s333
      %p342 = scmp.eq.s32.totalorder %s28, 0
      %p343 = por %p341, %p342
      %p344 = scmp.ne.s32.totalorder %s332, %s333
      %p345 = scmp.eq.s32.totalorder %s29, 2
      %p346 = por %p344, %p345
      %p348 = scmp.ne.s32.totalorder %s333, %s347
      %p349 = scmp.eq.s32.totalorder %s29, 0
      %p350 = por %p348, %p349
      %s352 = sadd.s32 %s351, 1
      %p355 = scmp.eq.s32.totalorder %s23, 2
      %p356 = scmp.ne.s32.totalorder %s351, %s353
      %p357 = scmp.eq.s32.totalorder %s23, 0
      %p358 = por %p356, %p357
      %p359 = scmp.ne.s32.totalorder %s351, %s353
      %p360 = scmp.eq.s32.totalorder %s28, 2
      %p361 = por %p359, %p360
      %p362 = scmp.ne.s32.totalorder %s353, %s354
      %p363 = scmp.eq.s32.totalorder %s28, 0
      %p364 = por %p362, %p363
      %p365 = scmp.ne.s32.totalorder %s353, %s354
      %p366 = scmp.eq.s32.totalorder %s29, 2
      %p367 = por %p365, %p366
      %p369 = scmp.ne.s32.totalorder %s354, %s368
      %p370 = scmp.eq.s32.totalorder %s29, 0
      %p371 = por %p369, %p370
      %s373 = sadd.s32 %s372, 1
      %p376 = scmp.eq.s32.totalorder %s23, 2
      %p377 = scmp.ne.s32.totalorder %s372, %s374
      %p378 = scmp.eq.s32.totalorder %s23, 0
      %p379 = por %p377, %p378
      %p380 = scmp.ne.s32.totalorder %s372, %s374
      %p381 = scmp.eq.s32.totalorder %s28, 2
      %p382 = por %p380, %p381
      %p383 = scmp.ne.s32.totalorder %s374, %s375
      %p384 = scmp.eq.s32.totalorder %s28, 0
      %p385 = por %p383, %p384
      %p386 = scmp.ne.s32.totalorder %s374, %s375
      %p387 = scmp.eq.s32.totalorder %s29, 2
      %p388 = por %p386, %p387
      %p390 = scmp.ne.s32.totalorder %s375, %s389
      %p391 = scmp.eq.s32.totalorder %s29, 0
      %p392 = por %p390, %p391
      %p393 = scmp.le.s32.totalorder 1, %s23
      %p394 = scmp.lt.s32.totalorder %s23, 4
      %p395 = pnand %p393, %p394
      %p396 = pneg %p395
      // Predicated region
      $region9: #{_forward_impl.1} parent=5 // pred_check
        _
      $region10: #{_forward_impl.1} parent=5 // pred_check_branch
        %398 = sbr.rel (%p395) target = $region12
      $region11: #{_forward_impl.1} parent=5 // pred_region
        %s399 = ssub.s32 %s23, 1
        // Predicated region
        $region13: #{_forward_impl.1} parent=11 // pred_check
          %p400 = pneg %p61
        $region14: #{_forward_impl.1} parent=11 // pred_check_branch
          %402 = sbr.rel (%p400) target = $region16
        $region15: #{_forward_impl.1} parent=11 // pred_region
          %s403 = smul.u32 4, %s33
          %p404 = scmp.lt.s32.totalorder %s403, 3
          %s405 = scalar_select %p404, %s403, 3
          %s406 = smul.addr %s405, 8
          %s407 = scalar_lea.vmem %s0, %s406
          %s408 = smul.u32 4, %s33
        $region16: #{_forward_impl.1} parent=11 // pred_fallthru
          _
        // Predicated region
        $region17: #{_forward_impl.1} parent=11 // pred_check
          %p409 = pneg %p87
        $region18: #{_forward_impl.1} parent=11 // pred_check_branch
          %411 = sbr.rel (%p409) target = $region20
        $region19: #{_forward_impl.1} parent=11 // pred_region
          %p412 = scmp.lt.s32.totalorder %s33, 0
          %s413 = scalar_select %p412, %s33, 0
          %s414 = scalar_lea.vmem %s1, %s413
        $region20: #{_forward_impl.1} parent=11 // pred_fallthru
          _
        // Predicated region
        $region21: #{_forward_impl.1} parent=11 // pred_check
          %p415 = pneg %p108
        $region22: #{_forward_impl.1} parent=11 // pred_check_branch
          %417 = sbr.rel (%p415) target = $region24
        $region23: #{_forward_impl.1} parent=11 // pred_region
          _
        $region24: #{_forward_impl.1} parent=11 // pred_fallthru
          _
        // Predicated region
        $region25: #{_forward_impl.1} parent=11 // pred_check
          %p418 = pneg %p129
        $region26: #{_forward_impl.1} parent=11 // pred_check_branch
          %420 = sbr.rel (%p418) target = $region28
        $region27: #{_forward_impl.1} parent=11 // pred_region
          _
        $region28: #{_forward_impl.1} parent=11 // pred_fallthru
          _
        // Predicated region
        $region29: #{_forward_impl.1} parent=11 // pred_check
          %p421 = pneg %p150
        $region30: #{_forward_impl.1} parent=11 // pred_check_branch
          %423 = sbr.rel (%p421) target = $region32
        $region31: #{_forward_impl.1} parent=11 // pred_region
          _
        $region32: #{_forward_impl.1} parent=11 // pred_fallthru
          _
        // Predicated region
        $region33: #{_forward_impl.1} parent=11 // pred_check
          %p424 = pneg %p176
        $region34: #{_forward_impl.1} parent=11 // pred_check_branch
          %426 = sbr.rel (%p424) target = $region36
        $region35: #{_forward_impl.1} parent=11 // pred_region
          %s427 = smul.u32 4, %s33
          %p428 = scmp.lt.s32.totalorder %s427, 3
          %s429 = scalar_select %p428, %s427, 3
          %s430 = smul.addr %s429, 8
          %s431 = scalar_lea.vmem %s5, %s430
          %s432 = smul.u32 4, %s33
        $region36: #{_forward_impl.1} parent=11 // pred_fallthru
          _
        // Predicated region
        $region37: #{_forward_impl.1} parent=11 // pred_check
          %p433 = pneg %p301
        $region38: #{_forward_impl.1} parent=11 // pred_check_branch
          %435 = sbr.rel (%p433) target = $region40
        $region39: #{_forward_impl.1} parent=11 // pred_region
          _
        $region40: #{_forward_impl.1} parent=11 // pred_fallthru
          _
        // Predicated region
        $region41: #{_forward_impl.1} parent=11 // pred_check
          %p436 = pneg %p322
        $region42: #{_forward_impl.1} parent=11 // pred_check_branch
          %438 = sbr.rel (%p436) target = $region44
        $region43: #{_forward_impl.1} parent=11 // pred_region
          _
        $region44: #{_forward_impl.1} parent=11 // pred_fallthru
          _
        // Predicated region
        $region45: #{_forward_impl.1} parent=11 // pred_check
          %p439 = pneg %p343
        $region46: #{_forward_impl.1} parent=11 // pred_check_branch
          %441 = sbr.rel (%p439) target = $region48
        $region47: #{_forward_impl.1} parent=11 // pred_region
          _
        $region48: #{_forward_impl.1} parent=11 // pred_fallthru
          _
        // Predicated region
        $region49: #{_forward_impl.1} parent=11 // pred_check
          %p442 = pneg %p364
        $region50: #{_forward_impl.1} parent=11 // pred_check_branch
          %444 = sbr.rel (%p442) target = $region52
        $region51: #{_forward_impl.1} parent=11 // pred_region
          _
        $region52: #{_forward_impl.1} parent=11 // pred_fallthru
          _
      $region12: #{_forward_impl.1} parent=5 // pred_fallthru
        _
      %p445 = scmp.lt.s32.totalorder %s23, 3
      // Predicated region
      $region53: #{_forward_impl.1} parent=5 // pred_check
        %p446 = pneg %p445
      $region54: #{_forward_impl.1} parent=5 // pred_check_branch
        %448 = sbr.rel (%p446) target = $region56
      $region55: #{_forward_impl.1} parent=5 // pred_region
        // Predicated region
        $region57: #{_forward_impl.1} parent=55 // pred_check
          %p449 = pneg %p196
        $region58: #{_forward_impl.1} parent=55 // pred_check_branch
          %451 = sbr.rel (%p449) target = $region60
        $region59: #{_forward_impl.1} parent=55 // pred_region
          %p452 = scmp.lt.s32.totalorder %s30, 2
          %s453 = scalar_select %p452, %s30, 2
          %s454 = smul.addr %s453, 16
          %s455 = smul.addr %s454, 4
          %s456 = scalar_lea.vmem %s6, %s455
        $region60: #{_forward_impl.1} parent=55 // pred_fallthru
          _
        // Predicated region
        $region61: #{_forward_impl.1} parent=55 // pred_check
          %p457 = pneg %p222
        $region62: #{_forward_impl.1} parent=55 // pred_check_branch
          %459 = sbr.rel (%p457) target = $region64
        $region63: #{_forward_impl.1} parent=55 // pred_region
          %p460 = scmp.lt.s32.totalorder %s30, 2
          %s461 = scalar_select %p460, %s30, 2
          %s462 = scalar_lea.vmem %s7, %s461
        $region64: #{_forward_impl.1} parent=55 // pred_fallthru
          _
        // Predicated region
        $region65: #{_forward_impl.1} parent=55 // pred_check
          %p463 = pneg %p248
        $region66: #{_forward_impl.1} parent=55 // pred_check_branch
          %465 = sbr.rel (%p463) target = $region68
        $region67: #{_forward_impl.1} parent=55 // pred_region
          %s466 = sand.u32 %s238, 1
          %s467 = scalar_lea.sflag [#allocation6], %s466
          %s468 = sand.u32 %s238, 1
          %s469 = smul.addr %s468, 64
          %s470 = scalar_lea.vmem [#allocation5], %s469
          %s472 = ssub.s32 1024, 1024
          %473 = vsyncadd %s467, %s472
          %s474 = smul.addr %s30, 16
          %s475 = smul.addr %s474, 64
          %s476 = scalar_lea.hbm %s8, %s475
          %s477 = sshll.u32 %s470, 4
          %s478 = int_to_ptr.vmem [resolvable:$true] %s477
          %483 = dma.hbm_to_vmem [thread:$0]  %s476, 1024, %s478, %s467, 64, 64, 4
        $region68: #{_forward_impl.1} parent=55 // pred_fallthru
          _
        // Predicated region
        $region69: #{_forward_impl.1} parent=55 // pred_check
          %p484 = pneg %p274
        $region70: #{_forward_impl.1} parent=55 // pred_check_branch
          %486 = sbr.rel (%p484) target = $region72
        $region71: #{_forward_impl.1} parent=55 // pred_region
          %p487 = scmp.lt.s32.totalorder %s30, 2
          %s488 = scalar_select %p487, %s30, 2
          %s489 = scalar_lea.vmem %s9, %s488
        $region72: #{_forward_impl.1} parent=55 // pred_fallthru
          _
      $region56: #{_forward_impl.1} parent=5 // pred_fallthru
        _
      %p490 = scmp.le.s32.totalorder 1, %s23
      %p491 = scmp.lt.s32.totalorder %s23, 4
      %p492 = pnand %p490, %p491
      %p493 = pneg %p492
      // Predicated region
      $region73: #{_forward_impl.1} parent=5 // pred_check
        _
      $region74: #{_forward_impl.1} parent=5 // pred_check_branch
        %495 = sbr.rel (%p492) target = $region76
      $region75: #{_forward_impl.1} parent=5 // pred_region
        %s496 = ssub.s32 %s23, 1
        %s497 = sand.u32 %s241, 1
        %s498 = scalar_lea.sflag [#allocation6], %s497
        %s499 = sand.u32 %s241, 1
        %s500 = smul.addr %s499, 64
        %s501 = scalar_lea.vmem [#allocation5], %s500
        // Predicated region
        $region77: #{_forward_impl.1} parent=75 // pred_check
          %p502 = pneg %p254
        $region78: #{_forward_impl.1} parent=75 // pred_check_branch
          %504 = sbr.rel (%p502) target = $region80
        $region79: #{_forward_impl.1} parent=75 // pred_region
          %505 = dma.done %s498, 1024
        $region80: #{_forward_impl.1} parent=75 // pred_fallthru
          _
        %s506 = smul.u32 4, %s33
        %p507 = scmp.lt.s32.totalorder %s506, 3
        %s508 = scalar_select %p507, %s506, 3
        %s509 = smul.addr %s508, 8
        %s510 = scalar_lea.vmem %s0, %s509
        %p511 = pneg %p61
        %p512 = pneg %p58
        %p513 = scmp.lt.s32.totalorder %s33, 0
        %s514 = scalar_select %p513, %s33, 0
        %s515 = scalar_lea.vmem %s1, %s514
        %p516 = pneg %p87
        %p517 = pneg %p84
        %p518 = pneg %p108
        %p519 = pneg %p105
        %p520 = pneg %p129
        %p521 = pneg %p126
        %p522 = pneg %p150
        %p523 = pneg %p147
        %s524 = smul.u32 4, %s33
        %p525 = scmp.lt.s32.totalorder %s524, 3
        %s526 = scalar_select %p525, %s524, 3
        %s527 = smul.addr %s526, 8
        %s528 = scalar_lea.vmem %s5, %s527
        %p529 = pneg %p176
        %p530 = pneg %p173
        %p531 = scmp.lt.s32.totalorder %s32, 2
        %s532 = scalar_select %p531, %s32, 2
        %s533 = smul.addr %s532, 16
        %s534 = smul.addr %s533, 4
        %s535 = scalar_lea.vmem %s6, %s534
        %p536 = pneg %p202
        %p537 = pneg %p199
        %p538 = scmp.lt.s32.totalorder %s32, 2
        %s539 = scalar_select %p538, %s32, 2
        %s540 = scalar_lea.vmem %s7, %s539
        %p541 = pneg %p228
        %p542 = pneg %p225
        %s543 = sand.u32 %s241, 1
        %s544 = scalar_lea.sflag [#allocation6], %s543
        %s545 = sand.u32 %s241, 1
        %s546 = smul.addr %s545, 64
        %s547 = scalar_lea.vmem [#allocation5], %s546
        %p548 = pneg %p254
        %p549 = pneg %p251
        %p550 = scmp.lt.s32.totalorder %s32, 2
        %s551 = scalar_select %p550, %s32, 2
        %s552 = scalar_lea.vmem %s9, %s551
        %p553 = pneg %p280
        %p554 = pneg %p277
        %p555 = pneg %p301
        %p556 = pneg %p298
        %p557 = pneg %p322
        %p558 = pneg %p319
        %p559 = pneg %p343
        %p560 = pneg %p340
        %p561 = pneg %p364
        %p562 = pneg %p361
        %p563 = pneg %p385
        %p564 = pneg %p382
        %s565 = smul.u32 4, %s33
        %p566 = scmp.lt.s32.totalorder %s565, 3
        %s567 = scalar_select %p566, %s565, 3
        %s568 = smul.addr %s567, 8
        %s569 = scalar_lea.vmem %s0, %s568
        %s570 = smul.u32 4, %s33
        %p571 = scmp.lt.s32.totalorder %s33, 0
        %s572 = scalar_select %p571, %s33, 0
        %s573 = scalar_lea.vmem %s1, %s572
        %s574 = smul.u32 4, %s33
        %p575 = scmp.lt.s32.totalorder %s574, 3
        %s576 = scalar_select %p575, %s574, 3
        %s577 = smul.addr %s576, 8
        %s578 = scalar_lea.vmem %s5, %s577
        %s579 = smul.u32 4, %s33
        %p580 = scmp.lt.s32.totalorder %s32, 2
        %s581 = scalar_select %p580, %s32, 2
        %s582 = smul.addr %s581, 16
        %s583 = smul.addr %s582, 4
        %s584 = scalar_lea.vmem %s6, %s583
        %p585 = scmp.lt.s32.totalorder %s32, 2
        %s586 = scalar_select %p585, %s32, 2
        %s587 = scalar_lea.vmem %s7, %s586
        %p588 = scmp.lt.s32.totalorder %s32, 2
        %s589 = scalar_select %p588, %s32, 2
        %s590 = scalar_lea.vmem %s9, %s589
        %p592 = scmp.eq.s32.totalorder %s32, 0
        %p593 = scmp.eq.s32.totalorder %s33, 0
        %p594 = pnand %p592, %p593
        %p595 = pneg %p594
        // Predicated region
        $region81: #{_forward_impl.1} parent=75 // pred_check
          _
        $region82: #{_forward_impl.1} parent=75 // pred_check_branch
          %597 = sbr.rel (%p594) target = $region84
        $region83: #{_forward_impl.1} parent=75 // pred_region
          %v598 = vld [vmem:[%s4] sm:$0xff]
          %v599 = vld [vmem:[%s4 + $0x8] sm:$0xff]
          %600 = vst [vmem:[#allocation2] sm:$0xff] %v598
          %601 = vst [vmem:[#allocation2 + $0x8] sm:$0xff] %v599
          %v602 = vpack.c.bf16 %v599, %v598
          %v604 = vunpack.c.l.b16 %v602
          %v605 = vunpack.c.h.b16 %v602
          %v606 = vpack.c.b16 %v604, %v604
          %v607 = vpack.c.b16 %v605, %v605
          %610 = vst [vmem:[#allocation3] sm:$0xf] %v606
          %611 = vst [vmem:[#allocation3 + $0x4] sm:$0xf] %v607
        $region84: #{_forward_impl.1} parent=75 // pred_fallthru
          _
        // Predicated region
        $region85: #{_forward_impl.1} parent=75 // pred_check
          %p612 = pneg %p593
        $region86: #{_forward_impl.1} parent=75 // pred_check_branch
          %614 = sbr.rel (%p612) target = $region88
        $region87: #{_forward_impl.1} parent=75 // pred_region
          %615 = vst [vmem:[#allocation4] sm:$0xff] 0.0
          %616 = vst [vmem:[#allocation4 + $0x8] sm:$0xff] 0.0
        $region88: #{_forward_impl.1} parent=75 // pred_fallthru
          _
        %v617 = vlaneseq
        %v618 = vand.u32 %v617, 127
        %v619 = vld [vmem:[%s569] sm:$0xff]
        %v620 = vld [vmem:[%s569 + $0x8] sm:$0xff]
        %v621 = vld [vmem:[%s569 + $0x10] sm:$0xff]
        %v622 = vld [vmem:[%s569 + $0x18] sm:$0xff]
        %623 = vset.pattern.permute.xlu0 0
        %624 = vperm.xlu0 %623, %v619
        %v625 = vpop.permute.xlu0 %624
        %626 = vset.pattern.permute.xlu0 0
        %627 = vperm.xlu0 %626, %v620
        %v628 = vpop.permute.xlu0 %627
        %629 = vset.pattern.permute.xlu0 0
        %630 = vperm.xlu0 %629, %v621
        %v631 = vpop.permute.xlu0 %630
        %632 = vset.pattern.permute.xlu0 0
        %633 = vperm.xlu0 %632, %v622
        %v634 = vpop.permute.xlu0 %633
        %vm635 = vcmp.eq.s32.totalorder %v625, %v618
        %vm636 = vcmp.eq.s32.totalorder %v628, %v618
        %vm637 = vcmp.eq.s32.totalorder %v631, %v618
        %vm638 = vcmp.eq.s32.totalorder %v634, %v618
        %v639 = vsel %vm635, 1, 0
        %v640 = vsel %vm636, 1, 0
        %v641 = vsel %vm637, 1, 0
        %v642 = vsel %vm638, 1, 0
        %v643 = vcvt.s32.f32 %v639
        %v644 = vcvt.s32.f32 %v640
        %v645 = vcvt.s32.f32 %v641
        %v646 = vcvt.s32.f32 %v642
        %v647 = vpack.c.bf16 %v644, %v643
        %v648 = vpack.c.bf16 %v646, %v645
        %v649 = vlaneseq
        %v650 = vshrl.u32 %v649, 7
        %v651 = vadd.s32 %v650, 8
        %v652 = vld [vmem:[%s573] sm:$0x1]
        %v653 = vlaneseq
        %v654 = vshrl.u32 %v653, 7
        %v655 = vsub.s32 0, %v654
        %v656 = vrot.slane %v652, %v655
        %vm657 = vcmp.eq.s32.totalorder %v650, %v656
        %vm658 = vcmp.eq.s32.totalorder %v651, %v656
        %v659 = vsel %vm657, 1, 0
        %v660 = vsel %vm658, 1, 0
        %v661 = vcvt.s32.f32 %v659
        %v662 = vcvt.s32.f32 %v660
        %v663 = vpack.c.bf16 %v662, %v661
        %v664 = vld [vmem:[#allocation3] sm:$0xf]
        %v665 = vld [vmem:[#allocation3 + $0x4] sm:$0xf]
        %v666 = vld [vmem:[%s578] sm:$0xff]
        %v667 = vld [vmem:[%s578 + $0x8] sm:$0xff]
        %v668 = vld [vmem:[%s578 + $0x10] sm:$0xff]
        %v669 = vld [vmem:[%s578 + $0x18] sm:$0xff]
        %v672 = vunpack.c.l.b16 %v664
        %v673 = vunpack.c.l.b16 %v665
        %v674 = vpack.c.b16 %v673, %v672
        %vm676 = vcmask 130048
        %v678 = vsel %vm676, %v647, 0
        %v681 = vsel %vm676, %v648, 0
        %683 = vmatprep.subr.bf16.mxu0 0
        %684 = vmatpush1.bf16.msra.mxu0 0
        %685 = vmatprep.subr.bf16.mxu0 0
        %686 = vmatpush1.bf16.msra.mxu0 0
        %687 = vmatprep.subr.bf16.mxu0 0
        %688 = vmatpush1.bf16.msra.mxu0 0
        %689 = vmatprep.subr.bf16.mxu0 0
        %690 = vmatpush1.bf16.msra.mxu0 0
        %691 = vmatprep.subr.bf16.mxu0 0
        %692 = vmatpush1.bf16.msra.mxu0 0
        %693 = vmatprep.subr.bf16.mxu0 0
        %694 = vmatpush1.bf16.msra.mxu0 0
        %695 = vmatprep.subr.bf16.mxu0 0
        %696 = vmatpush1.bf16.msra.mxu0 0
        %697 = vmatprep.subr.bf16.mxu0 0
        %698 = vmatpush1.bf16.msra.mxu0 %v674
        %699 = vmatprep.subr.bf16.mxu0 0
        %700 = vmatpush2.bf16.msra.mxu0 0
        %701 = vmatprep.subr.bf16.mxu0 0
        %702 = vmatpush2.bf16.msra.mxu0 0
        %703 = vmatprep.subr.bf16.mxu0 0
        %704 = vmatpush2.bf16.msra.mxu0 0
        %705 = vmatprep.subr.bf16.mxu0 0
        %706 = vmatpush2.bf16.msra.mxu0 0
        %707 = vmatprep.subr.bf16.mxu0 0
        %708 = vmatpush2.bf16.msra.mxu0 0
        %709 = vmatprep.subr.bf16.mxu0 0
        %710 = vmatpush2.bf16.msra.mxu0 0
        %711 = vmatprep.subr.bf16.mxu0 0
        %712 = vmatpush2.bf16.msra.mxu0 0
        %713 = vmatprep.subr.bf16.mxu0 0
        %714 = vmatpush2.bf16.msra.mxu0 0
        %715 = vmatprep.mubr.bf16.mxu0 0
        %716 = vmatmul.mubr.bf16.gmra.mxu0 %v678
        %v717 = vpop.f32.mrf.mxu0
        %v718 = vadd.f32 %v666, %v717
        %v719 = vpop.f32.mrf.mxu0
        %v720 = vpop.f32.mrf.mxu0
        %v721 = vadd.f32 %v667, %v720
        %v722 = vpop.f32.mrf.mxu0
        %723 = vmatprep.mubr.bf16.mxu0 0
        %724 = vmatmul.mubr.bf16.gmra.mxu0 %v681
        %v725 = vpop.f32.mrf.mxu0
        %v726 = vadd.f32 %v668, %v725
        %v727 = vpop.f32.mrf.mxu0
        %v728 = vpop.f32.mrf.mxu0
        %v729 = vadd.f32 %v669, %v728
        %v730 = vpop.f32.mrf.mxu0
        %731 = vdwg.mxu0
        %v732 = vmax.f32 %v718, 0.0
        %v733 = vmax.f32 %v721, 0.0
        %v734 = vmax.f32 %v726, 0.0
        %v735 = vmax.f32 %v729, 0.0
        %v736 = vld [vmem:[#allocation4] sm:$0xff]
        %v737 = vld [vmem:[#allocation4 + $0x8] sm:$0xff]
        %v738 = vpack.c.bf16 %v733, %v732
        %v739 = vpack.c.bf16 %v735, %v734
        %vm740 = vcmask 261120
        %v742 = vsel %vm740, %v663, 0
        %744 = vmatprep.subr.bf16.mxu0 0
        %745 = vmatpush1.bf16.msra.mxu0 0
        %746 = vmatprep.subr.bf16.mxu0 0
        %747 = vmatpush1.bf16.msra.mxu0 0
        %748 = vmatprep.subr.bf16.mxu0 0
        %749 = vmatpush1.bf16.msra.mxu0 0
        %750 = vmatprep.subr.bf16.mxu0 0
        %751 = vmatpush1.bf16.msra.mxu0 0
        %752 = vmatprep.subr.bf16.mxu0 0
        %753 = vmatpush1.bf16.msra.mxu0 0
        %754 = vmatprep.subr.bf16.mxu0 0
        %755 = vmatpush1.bf16.msra.mxu0 0
        %756 = vmatprep.subr.bf16.mxu0 0
        %757 = vmatpush1.bf16.msra.mxu0 %v739
        %758 = vmatprep.subr.bf16.mxu0 0
        %759 = vmatpush1.bf16.msra.mxu0 %v738
        %760 = vmatprep.subr.bf16.mxu0 0
        %761 = vmatpush2.bf16.msra.mxu0 0
        %762 = vmatprep.subr.bf16.mxu0 0
        %763 = vmatpush2.bf16.msra.mxu0 0
        %764 = vmatprep.subr.bf16.mxu0 0
        %765 = vmatpush2.bf16.msra.mxu0 0
        %766 = vmatprep.subr.bf16.mxu0 0
        %767 = vmatpush2.bf16.msra.mxu0 0
        %768 = vmatprep.subr.bf16.mxu0 0
        %769 = vmatpush2.bf16.msra.mxu0 0
        %770 = vmatprep.subr.bf16.mxu0 0
        %771 = vmatpush2.bf16.msra.mxu0 0
        %772 = vmatprep.subr.bf16.mxu0 0
        %773 = vmatpush2.bf16.msra.mxu0 0
        %774 = vmatprep.subr.bf16.mxu0 0
        %775 = vmatpush2.bf16.msra.mxu0 0
        %776 = vmatprep.mubr.bf16.mxu0 0
        %777 = vmatmul.mubr.bf16.gmra.mxu0 %v742
        %v778 = vpop.f32.mrf.mxu0
        %v779 = vadd.f32 0.0, %v778
        %v780 = vpop.f32.mrf.mxu0
        %v781 = vpop.f32.mrf.mxu0
        %v782 = vadd.f32 0.0, %v781
        %v783 = vpop.f32.mrf.mxu0
        %784 = vdwg.mxu0
        %v785 = vadd.f32 %v736, %v779
        %v786 = vadd.f32 %v737, %v782
        %787 = vst [vmem:[#allocation4] sm:$0xff] %v785
        %788 = vst [vmem:[#allocation4 + $0x8] sm:$0xff] %v786
        // Predicated region
        $region89: #{_forward_impl.1} parent=75 // pred_check
          %p789 = pneg %p593
        $region90: #{_forward_impl.1} parent=75 // pred_check_branch
          %791 = sbr.rel (%p789) target = $region92
        $region91: #{_forward_impl.1} parent=75 // pred_region
          %v792 = vld [vmem:[#allocation2] sm:$0xff]
          %v793 = vld [vmem:[#allocation2 + $0x8] sm:$0xff]
          %v794 = vld [vmem:[#allocation4] sm:$0xff]
          %v795 = vld [vmem:[#allocation4 + $0x8] sm:$0xff]
          %v796 = vadd.f32 %v792, %v794
          %v797 = vadd.f32 %v793, %v795
          %v798 = vpack.c.bf16 %v797, %v796
          %v799 = vld [vmem:[%s584] sm:$0xf]
          %v800 = vld [vmem:[%s584 + $0x4] sm:$0xf]
          %v801 = vld [vmem:[%s584 + $0x8] sm:$0xf]
          %v802 = vld [vmem:[%s584 + $0xc] sm:$0xf]
          %v803 = vld [vmem:[%s584 + $0x10] sm:$0xf]
          %v804 = vld [vmem:[%s584 + $0x14] sm:$0xf]
          %v805 = vld [vmem:[%s584 + $0x18] sm:$0xf]
          %v806 = vld [vmem:[%s584 + $0x1c] sm:$0xf]
          %v807 = vld [vmem:[%s584 + $0x20] sm:$0xf]
          %v808 = vld [vmem:[%s584 + $0x24] sm:$0xf]
          %v809 = vld [vmem:[%s584 + $0x28] sm:$0xf]
          %v810 = vld [vmem:[%s584 + $0x2c] sm:$0xf]
          %v811 = vld [vmem:[%s584 + $0x30] sm:$0xf]
          %v812 = vld [vmem:[%s584 + $0x34] sm:$0xf]
          %v813 = vld [vmem:[%s584 + $0x38] sm:$0xf]
          %v814 = vld [vmem:[%s584 + $0x3c] sm:$0xf]
          %v815 = vld [vmem:[%s587] sm:$0x1]
          %v817 = vlaneseq
          %v818 = vshrl.u32 %v817, 7
          %v819 = vsub.s32 0, %v818
          %v820 = vrot.slane %v815, %v819
          %v838 = vunpack.c.l.b16 %v799
          %v839 = vunpack.c.l.b16 %v800
          %v840 = vunpack.c.l.b16 %v801
          %v841 = vunpack.c.l.b16 %v802
          %v842 = vunpack.c.l.b16 %v803
          %v843 = vunpack.c.l.b16 %v804
          %v844 = vunpack.c.l.b16 %v805
          %v845 = vunpack.c.l.b16 %v806
          %v846 = vunpack.c.l.b16 %v807
          %v847 = vunpack.c.l.b16 %v808
          %v848 = vunpack.c.l.b16 %v809
          %v849 = vunpack.c.l.b16 %v810
          %v850 = vunpack.c.l.b16 %v811
          %v851 = vunpack.c.l.b16 %v812
          %v852 = vunpack.c.l.b16 %v813
          %v853 = vunpack.c.l.b16 %v814
          %v854 = vpack.c.b16 %v839, %v838
          %v855 = vpack.c.b16 %v841, %v840
          %v856 = vpack.c.b16 %v843, %v842
          %v857 = vpack.c.b16 %v845, %v844
          %v858 = vpack.c.b16 %v847, %v846
          %v859 = vpack.c.b16 %v849, %v848
          %v860 = vpack.c.b16 %v851, %v850
          %v861 = vpack.c.b16 %v853, %v852
          %870 = vmatprep.subr.bf16.mxu0 0
          %871 = vmatpush1.bf16.msra.mxu0 %v861
          %872 = vmatprep.subr.bf16.mxu0 0
          %873 = vmatpush1.bf16.msra.mxu0 %v860
          %874 = vmatprep.subr.bf16.mxu0 0
          %875 = vmatpush1.bf16.msra.mxu0 %v859
          %876 = vmatprep.subr.bf16.mxu0 0
          %877 = vmatpush1.bf16.msra.mxu0 %v858
          %878 = vmatprep.subr.bf16.mxu0 0
          %879 = vmatpush1.bf16.msra.mxu0 %v857
          %880 = vmatprep.subr.bf16.mxu0 0
          %881 = vmatpush1.bf16.msra.mxu0 %v856
          %882 = vmatprep.subr.bf16.mxu0 0
          %883 = vmatpush1.bf16.msra.mxu0 %v855
          %884 = vmatprep.subr.bf16.mxu0 0
          %885 = vmatpush1.bf16.msra.mxu0 %v854
          %886 = vmatprep.subr.bf16.mxu0 0
          %887 = vmatpush2.bf16.msra.mxu0 0
          %888 = vmatprep.subr.bf16.mxu0 0
          %889 = vmatpush2.bf16.msra.mxu0 0
          %890 = vmatprep.subr.bf16.mxu0 0
          %891 = vmatpush2.bf16.msra.mxu0 0
          %892 = vmatprep.subr.bf16.mxu0 0
          %893 = vmatpush2.bf16.msra.mxu0 0
          %894 = vmatprep.subr.bf16.mxu0 0
          %895 = vmatpush2.bf16.msra.mxu0 0
          %896 = vmatprep.subr.bf16.mxu0 0
          %897 = vmatpush2.bf16.msra.mxu0 0
          %898 = vmatprep.subr.bf16.mxu0 0
          %899 = vmatpush2.bf16.msra.mxu0 0
          %900 = vmatprep.subr.bf16.mxu0 0
          %901 = vmatpush2.bf16.msra.mxu0 0
          %902 = vmatprep.mubr.bf16.mxu0 0
          %903 = vmatmul.mubr.bf16.gmra.mxu0 %v798
          %v904 = vpop.f32.mrf.mxu0
          %v905 = vadd.f32 %v820, %v904
          %v906 = vpop.f32.mrf.mxu0
          %v907 = vpop.f32.mrf.mxu0
          %v908 = vadd.f32 %v820, %v907
          %v909 = vpop.f32.mrf.mxu0
          %910 = vdwg.mxu0
          %v911 = vmax.f32 %v905, 0.0
          %v912 = vmax.f32 %v908, 0.0
          %v913 = vpack.c.bf16 %v912, %v911
          %v914 = vld [vmem:[%s501] sm:$0xf]
          %v915 = vld [vmem:[%s501 + $0x4] sm:$0xf]
          %v916 = vld [vmem:[%s501 + $0x8] sm:$0xf]
          %v917 = vld [vmem:[%s501 + $0xc] sm:$0xf]
          %v918 = vld [vmem:[%s501 + $0x10] sm:$0xf]
          %v919 = vld [vmem:[%s501 + $0x14] sm:$0xf]
          %v920 = vld [vmem:[%s501 + $0x18] sm:$0xf]
          %v921 = vld [vmem:[%s501 + $0x1c] sm:$0xf]
          %v922 = vld [vmem:[%s501 + $0x20] sm:$0xf]
          %v923 = vld [vmem:[%s501 + $0x24] sm:$0xf]
          %v924 = vld [vmem:[%s501 + $0x28] sm:$0xf]
          %v925 = vld [vmem:[%s501 + $0x2c] sm:$0xf]
          %v926 = vld [vmem:[%s501 + $0x30] sm:$0xf]
          %v927 = vld [vmem:[%s501 + $0x34] sm:$0xf]
          %v928 = vld [vmem:[%s501 + $0x38] sm:$0xf]
          %v929 = vld [vmem:[%s501 + $0x3c] sm:$0xf]
          %v930 = vld [vmem:[%s590] sm:$0x1]
          %v932 = vlaneseq
          %v933 = vshrl.u32 %v932, 7
          %v934 = vsub.s32 0, %v933
          %v935 = vrot.slane %v930, %v934
          %v953 = vunpack.c.l.b16 %v914
          %v954 = vunpack.c.l.b16 %v915
          %v955 = vunpack.c.l.b16 %v916
          %v956 = vunpack.c.l.b16 %v917
          %v957 = vunpack.c.l.b16 %v918
          %v958 = vunpack.c.l.b16 %v919
          %v959 = vunpack.c.l.b16 %v920
          %v960 = vunpack.c.l.b16 %v921
          %v961 = vunpack.c.l.b16 %v922
          %v962 = vunpack.c.l.b16 %v923
          %v963 = vunpack.c.l.b16 %v924
          %v964 = vunpack.c.l.b16 %v925
          %v965 = vunpack.c.l.b16 %v926
          %v966 = vunpack.c.l.b16 %v927
          %v967 = vunpack.c.l.b16 %v928
          %v968 = vunpack.c.l.b16 %v929
          %v969 = vpack.c.b16 %v954, %v953
          %v970 = vpack.c.b16 %v956, %v955
          %v971 = vpack.c.b16 %v958, %v957
          %v972 = vpack.c.b16 %v960, %v959
          %v973 = vpack.c.b16 %v962, %v961
          %v974 = vpack.c.b16 %v964, %v963
          %v975 = vpack.c.b16 %v966, %v965
          %v976 = vpack.c.b16 %v968, %v967
          %985 = vmatprep.subr.bf16.mxu0 0
          %986 = vmatpush1.bf16.msra.mxu0 %v976
          %987 = vmatprep.subr.bf16.mxu0 0
          %988 = vmatpush1.bf16.msra.mxu0 %v975
          %989 = vmatprep.subr.bf16.mxu0 0
          %990 = vmatpush1.bf16.msra.mxu0 %v974
          %991 = vmatprep.subr.bf16.mxu0 0
          %992 = vmatpush1.bf16.msra.mxu0 %v973
          %993 = vmatprep.subr.bf16.mxu0 0
          %994 = vmatpush1.bf16.msra.mxu0 %v972
          %995 = vmatprep.subr.bf16.mxu0 0
          %996 = vmatpush1.bf16.msra.mxu0 %v971
          %997 = vmatprep.subr.bf16.mxu0 0
          %998 = vmatpush1.bf16.msra.mxu0 %v970
          %999 = vmatprep.subr.bf16.mxu0 0
          %1000 = vmatpush1.bf16.msra.mxu0 %v969
          %1001 = vmatprep.subr.bf16.mxu0 0
          %1002 = vmatpush2.bf16.msra.mxu0 0
          %1003 = vmatprep.subr.bf16.mxu0 0
          %1004 = vmatpush2.bf16.msra.mxu0 0
          %1005 = vmatprep.subr.bf16.mxu0 0
          %1006 = vmatpush2.bf16.msra.mxu0 0
          %1007 = vmatprep.subr.bf16.mxu0 0
          %1008 = vmatpush2.bf16.msra.mxu0 0
          %1009 = vmatprep.subr.bf16.mxu0 0
          %1010 = vmatpush2.bf16.msra.mxu0 0
          %1011 = vmatprep.subr.bf16.mxu0 0
          %1012 = vmatpush2.bf16.msra.mxu0 0
          %1013 = vmatprep.subr.bf16.mxu0 0
          %1014 = vmatpush2.bf16.msra.mxu0 0
          %1015 = vmatprep.subr.bf16.mxu0 0
          %1016 = vmatpush2.bf16.msra.mxu0 0
          %1017 = vmatprep.mubr.bf16.mxu0 0
          %1018 = vmatmul.mubr.bf16.gmra.mxu0 %v913
          %v1019 = vpop.f32.mrf.mxu0
          %v1020 = vadd.f32 %v935, %v1019
          %v1021 = vpop.f32.mrf.mxu0
          %v1022 = vpop.f32.mrf.mxu0
          %v1023 = vadd.f32 %v935, %v1022
          %v1024 = vpop.f32.mrf.mxu0
          %1025 = vdwg.mxu0
          %v1026 = vmax.f32 %v1020, 0.0
          %v1027 = vmax.f32 %v1023, 0.0
          %v1028 = vld [vmem:[%s3] sm:$0xff]
          %v1029 = vld [vmem:[%s3 + $0x8] sm:$0xff]
          %1031 = vset.pattern.permute.xlu0 0
          %1032 = vperm.xlu0 %1031, %v1028
          %v1033 = vpop.permute.xlu0 %1032
          %1036 = vset.pattern.permute.xlu0 0
          %1037 = vperm.xlu0 %1036, %v1029
          %v1038 = vpop.permute.xlu0 %1037
          %v1040 = vmul.f32 %v1026, %v1033
          %v1041 = vmul.f32 %v1027, %v1038
          %v1042 = vadd.f32 %v1040, %v792
          %v1043 = vadd.f32 %v1041, %v793
          %1044 = vst [vmem:[#allocation2] sm:$0xff] %v1042
          %1045 = vst [vmem:[#allocation2 + $0x8] sm:$0xff] %v1043
          %v1046 = vpack.c.bf16 %v1043, %v1042
          %v1048 = vunpack.c.l.b16 %v1046
          %v1049 = vunpack.c.h.b16 %v1046
          %v1050 = vpack.c.b16 %v1048, %v1048
          %v1051 = vpack.c.b16 %v1049, %v1049
          %1054 = vst [vmem:[#allocation3] sm:$0xf] %v1050
          %1055 = vst [vmem:[#allocation3 + $0x4] sm:$0xf] %v1051
        $region92: #{_forward_impl.1} parent=75 // pred_fallthru
          _
        %p1056 = scmp.eq.s32.totalorder %s32, 2
        %p1057 = pnand %p593, %p1056
        %p1058 = pneg %p1057
        // Predicated region
        $region93: #{_forward_impl.1} parent=75 // pred_check
          _
        $region94: #{_forward_impl.1} parent=75 // pred_check_branch
          %1060 = sbr.rel (%p1057) target = $region96
        $region95: #{_forward_impl.1} parent=75 // pred_region
          %v1061 = vld [vmem:[%s2] sm:$0x1]
          %v1062 = vlaneseq
          %v1063 = vshrl.u32 %v1062, 7
          %v1064 = vsub.s32 0, %v1063
          %v1065 = vrot.slane %v1061, %v1064
          %vm1066 = vcmp.eq.s32.totalorder %v650, %v1065
          %v1067 = vsel %vm1066, 1, 0
          %v1068 = vcvt.s32.f32 %v1067
          %v1069 = vpack.c.bf16 %v1068, %v1068
          %v1070 = vld [vmem:[#allocation3] sm:$0xf]
          %v1071 = vld [vmem:[#allocation3 + $0x4] sm:$0xf]
          %v1074 = vunpack.c.l.b16 %v1070
          %v1075 = vunpack.c.l.b16 %v1071
          %v1076 = vpack.c.b16 %v1075, %v1074
          %v1079 = vsel %vm676, %v1069, 0
          %1081 = vmatprep.subr.bf16.mxu0 0
          %1082 = vmatpush1.bf16.msra.mxu0 0
          %1083 = vmatprep.subr.bf16.mxu0 0
          %1084 = vmatpush1.bf16.msra.mxu0 0
          %1085 = vmatprep.subr.bf16.mxu0 0
          %1086 = vmatpush1.bf16.msra.mxu0 0
          %1087 = vmatprep.subr.bf16.mxu0 0
          %1088 = vmatpush1.bf16.msra.mxu0 0
          %1089 = vmatprep.subr.bf16.mxu0 0
          %1090 = vmatpush1.bf16.msra.mxu0 0
          %1091 = vmatprep.subr.bf16.mxu0 0
          %1092 = vmatpush1.bf16.msra.mxu0 0
          %1093 = vmatprep.subr.bf16.mxu0 0
          %1094 = vmatpush1.bf16.msra.mxu0 0
          %1095 = vmatprep.subr.bf16.mxu0 0
          %1096 = vmatpush1.bf16.msra.mxu0 %v1076
          %1097 = vmatprep.subr.bf16.mxu0 0
          %1098 = vmatpush2.bf16.msra.mxu0 0
          %1099 = vmatprep.subr.bf16.mxu0 0
          %1100 = vmatpush2.bf16.msra.mxu0 0
          %1101 = vmatprep.subr.bf16.mxu0 0
          %1102 = vmatpush2.bf16.msra.mxu0 0
          %1103 = vmatprep.subr.bf16.mxu0 0
          %1104 = vmatpush2.bf16.msra.mxu0 0
          %1105 = vmatprep.subr.bf16.mxu0 0
          %1106 = vmatpush2.bf16.msra.mxu0 0
          %1107 = vmatprep.subr.bf16.mxu0 0
          %1108 = vmatpush2.bf16.msra.mxu0 0
          %1109 = vmatprep.subr.bf16.mxu0 0
          %1110 = vmatpush2.bf16.msra.mxu0 0
          %1111 = vmatprep.subr.bf16.mxu0 0
          %1112 = vmatpush2.bf16.msra.mxu0 0
          %1113 = vmatprep.mubr.bf16.mxu0 0
          %1114 = vmatmul.mubr.bf16.gmra.mxu0 %v1079
          %v1115 = vpop.f32.mrf.mxu0
          %v1116 = vadd.f32 0.0, %v1115
          %v1117 = vpop.f32.mrf.mxu0
          %v1118 = vpop.f32.mrf.mxu0
          %v1119 = vpop.f32.mrf.mxu0
          %1120 = vdwg.mxu0
          %v1121 = vpack.c.bf16 %v1116, %v1116
          %v1122 = vld [vmem:[%s10] sm:$0xf]
          %v1123 = vld [vmem:[%s10 + $0x4] sm:$0xf]
          %v1124 = vld [vmem:[%s10 + $0x8] sm:$0xf]
          %v1125 = vld [vmem:[%s10 + $0xc] sm:$0xf]
          %v1126 = vld [vmem:[%s10 + $0x10] sm:$0xf]
          %v1127 = vld [vmem:[%s10 + $0x14] sm:$0xf]
          %v1128 = vld [vmem:[%s10 + $0x18] sm:$0xf]
          %v1129 = vld [vmem:[%s10 + $0x1c] sm:$0xf]
          %v1130 = vld [vmem:[%s10 + $0x20] sm:$0xf]
          %v1131 = vld [vmem:[%s10 + $0x24] sm:$0xf]
          %v1132 = vld [vmem:[%s10 + $0x28] sm:$0xf]
          %v1133 = vld [vmem:[%s10 + $0x2c] sm:$0xf]
          %v1134 = vld [vmem:[%s10 + $0x30] sm:$0xf]
          %v1135 = vld [vmem:[%s10 + $0x34] sm:$0xf]
          %v1136 = vld [vmem:[%s10 + $0x38] sm:$0xf]
          %v1137 = vld [vmem:[%s10 + $0x3c] sm:$0xf]
          %v1138 = vld [vmem:[%s11] sm:$0x1]
          %v1140 = vlaneseq
          %v1141 = vshrl.u32 %v1140, 7
          %v1142 = vsub.s32 0, %v1141
          %v1143 = vrot.slane %v1138, %v1142
          %v1161 = vunpack.c.l.b16 %v1122
          %v1162 = vunpack.c.l.b16 %v1123
          %v1163 = vunpack.c.l.b16 %v1124
          %v1164 = vunpack.c.l.b16 %v1125
          %v1165 = vunpack.c.l.b16 %v1126
          %v1166 = vunpack.c.l.b16 %v1127
          %v1167 = vunpack.c.l.b16 %v1128
          %v1168 = vunpack.c.l.b16 %v1129
          %v1169 = vunpack.c.l.b16 %v1130
          %v1170 = vunpack.c.l.b16 %v1131
          %v1171 = vunpack.c.l.b16 %v1132
          %v1172 = vunpack.c.l.b16 %v1133
          %v1173 = vunpack.c.l.b16 %v1134
          %v1174 = vunpack.c.l.b16 %v1135
          %v1175 = vunpack.c.l.b16 %v1136
          %v1176 = vunpack.c.l.b16 %v1137
          %v1177 = vpack.c.b16 %v1162, %v1161
          %v1178 = vpack.c.b16 %v1164, %v1163
          %v1179 = vpack.c.b16 %v1166, %v1165
          %v1180 = vpack.c.b16 %v1168, %v1167
          %v1181 = vpack.c.b16 %v1170, %v1169
          %v1182 = vpack.c.b16 %v1172, %v1171
          %v1183 = vpack.c.b16 %v1174, %v1173
          %v1184 = vpack.c.b16 %v1176, %v1175
          %1193 = vmatprep.subr.bf16.mxu0 0
          %1194 = vmatpush1.bf16.msra.mxu0 %v1184
          %1195 = vmatprep.subr.bf16.mxu0 0
          %1196 = vmatpush1.bf16.msra.mxu0 %v1183
          %1197 = vmatprep.subr.bf16.mxu0 0
          %1198 = vmatpush1.bf16.msra.mxu0 %v1182
          %1199 = vmatprep.subr.bf16.mxu0 0
          %1200 = vmatpush1.bf16.msra.mxu0 %v1181
          %1201 = vmatprep.subr.bf16.mxu0 0
          %1202 = vmatpush1.bf16.msra.mxu0 %v1180
          %1203 = vmatprep.subr.bf16.mxu0 0
          %1204 = vmatpush1.bf16.msra.mxu0 %v1179
          %1205 = vmatprep.subr.bf16.mxu0 0
          %1206 = vmatpush1.bf16.msra.mxu0 %v1178
          %1207 = vmatprep.subr.bf16.mxu0 0
          %1208 = vmatpush1.bf16.msra.mxu0 %v1177
          %1209 = vmatprep.subr.bf16.mxu0 0
          %1210 = vmatpush2.bf16.msra.mxu0 0
          %1211 = vmatprep.subr.bf16.mxu0 0
          %1212 = vmatpush2.bf16.msra.mxu0 0
          %1213 = vmatprep.subr.bf16.mxu0 0
          %1214 = vmatpush2.bf16.msra.mxu0 0
          %1215 = vmatprep.subr.bf16.mxu0 0
          %1216 = vmatpush2.bf16.msra.mxu0 0
          %1217 = vmatprep.subr.bf16.mxu0 0
          %1218 = vmatpush2.bf16.msra.mxu0 0
          %1219 = vmatprep.subr.bf16.mxu0 0
          %1220 = vmatpush2.bf16.msra.mxu0 0
          %1221 = vmatprep.subr.bf16.mxu0 0
          %1222 = vmatpush2.bf16.msra.mxu0 0
          %1223 = vmatprep.subr.bf16.mxu0 0
          %1224 = vmatpush2.bf16.msra.mxu0 0
          %1225 = vmatprep.mubr.bf16.mxu0 0
          %1226 = vmatmul.mubr.bf16.gmra.mxu0 %v1121
          %v1227 = vpop.f32.mrf.mxu0
          %v1228 = vadd.f32 %v1143, %v1227
          %v1229 = vpop.f32.mrf.mxu0
          %v1230 = vpop.f32.mrf.mxu0
          %v1231 = vpop.f32.mrf.mxu0
          %1232 = vdwg.mxu0
          %v1233 = vmax.f32 %v1228, 0.0
          %v1234 = vpack.c.bf16 %v1233, %v1233
          %v1235 = vld [vmem:[%s12] sm:$0xf]
          %v1236 = vld [vmem:[%s12 + $0x4] sm:$0xf]
          %v1237 = vld [vmem:[%s12 + $0x8] sm:$0xf]
          %v1238 = vld [vmem:[%s12 + $0xc] sm:$0xf]
          %v1239 = vld [vmem:[%s12 + $0x10] sm:$0xf]
          %v1240 = vld [vmem:[%s12 + $0x14] sm:$0xf]
          %v1241 = vld [vmem:[%s12 + $0x18] sm:$0xf]
          %v1242 = vld [vmem:[%s12 + $0x1c] sm:$0xf]
          %v1243 = vld [vmem:[%s12 + $0x20] sm:$0xf]
          %v1244 = vld [vmem:[%s12 + $0x24] sm:$0xf]
          %v1245 = vld [vmem:[%s12 + $0x28] sm:$0xf]
          %v1246 = vld [vmem:[%s12 + $0x2c] sm:$0xf]
          %v1247 = vld [vmem:[%s12 + $0x30] sm:$0xf]
          %v1248 = vld [vmem:[%s12 + $0x34] sm:$0xf]
          %v1249 = vld [vmem:[%s12 + $0x38] sm:$0xf]
          %v1250 = vld [vmem:[%s12 + $0x3c] sm:$0xf]
          %v1251 = vld [vmem:[%s13] sm:$0x1]
          %v1253 = vlaneseq
          %v1254 = vshrl.u32 %v1253, 7
          %v1255 = vsub.s32 0, %v1254
          %v1256 = vrot.slane %v1251, %v1255
          %v1274 = vunpack.c.l.b16 %v1235
          %v1275 = vunpack.c.l.b16 %v1236
          %v1276 = vunpack.c.l.b16 %v1237
          %v1277 = vunpack.c.l.b16 %v1238
          %v1278 = vunpack.c.l.b16 %v1239
          %v1279 = vunpack.c.l.b16 %v1240
          %v1280 = vunpack.c.l.b16 %v1241
          %v1281 = vunpack.c.l.b16 %v1242
          %v1282 = vunpack.c.l.b16 %v1243
          %v1283 = vunpack.c.l.b16 %v1244
          %v1284 = vunpack.c.l.b16 %v1245
          %v1285 = vunpack.c.l.b16 %v1246
          %v1286 = vunpack.c.l.b16 %v1247
          %v1287 = vunpack.c.l.b16 %v1248
          %v1288 = vunpack.c.l.b16 %v1249
          %v1289 = vunpack.c.l.b16 %v1250
          %v1290 = vpack.c.b16 %v1275, %v1274
          %v1291 = vpack.c.b16 %v1277, %v1276
          %v1292 = vpack.c.b16 %v1279, %v1278
          %v1293 = vpack.c.b16 %v1281, %v1280
          %v1294 = vpack.c.b16 %v1283, %v1282
          %v1295 = vpack.c.b16 %v1285, %v1284
          %v1296 = vpack.c.b16 %v1287, %v1286
          %v1297 = vpack.c.b16 %v1289, %v1288
          %1306 = vmatprep.subr.bf16.mxu0 0
          %1307 = vmatpush1.bf16.msra.mxu0 %v1297
          %1308 = vmatprep.subr.bf16.mxu0 0
          %1309 = vmatpush1.bf16.msra.mxu0 %v1296
          %1310 = vmatprep.subr.bf16.mxu0 0
          %1311 = vmatpush1.bf16.msra.mxu0 %v1295
          %1312 = vmatprep.subr.bf16.mxu0 0
          %1313 = vmatpush1.bf16.msra.mxu0 %v1294
          %1314 = vmatprep.subr.bf16.mxu0 0
          %1315 = vmatpush1.bf16.msra.mxu0 %v1293
          %1316 = vmatprep.subr.bf16.mxu0 0
          %1317 = vmatpush1.bf16.msra.mxu0 %v1292
          %1318 = vmatprep.subr.bf16.mxu0 0
          %1319 = vmatpush1.bf16.msra.mxu0 %v1291
          %1320 = vmatprep.subr.bf16.mxu0 0
          %1321 = vmatpush1.bf16.msra.mxu0 %v1290
          %1322 = vmatprep.subr.bf16.mxu0 0
          %1323 = vmatpush2.bf16.msra.mxu0 0
          %1324 = vmatprep.subr.bf16.mxu0 0
          %1325 = vmatpush2.bf16.msra.mxu0 0
          %1326 = vmatprep.subr.bf16.mxu0 0
          %1327 = vmatpush2.bf16.msra.mxu0 0
          %1328 = vmatprep.subr.bf16.mxu0 0
          %1329 = vmatpush2.bf16.msra.mxu0 0
          %1330 = vmatprep.subr.bf16.mxu0 0
          %1331 = vmatpush2.bf16.msra.mxu0 0
          %1332 = vmatprep.subr.bf16.mxu0 0
          %1333 = vmatpush2.bf16.msra.mxu0 0
          %1334 = vmatprep.subr.bf16.mxu0 0
          %1335 = vmatpush2.bf16.msra.mxu0 0
          %1336 = vmatprep.subr.bf16.mxu0 0
          %1337 = vmatpush2.bf16.msra.mxu0 0
          %1338 = vmatprep.mubr.bf16.mxu0 0
          %1339 = vmatmul.mubr.bf16.gmra.mxu0 %v1234
          %v1340 = vpop.f32.mrf.mxu0
          %v1341 = vadd.f32 %v1256, %v1340
          %v1342 = vpop.f32.mrf.mxu0
          %v1343 = vpop.f32.mrf.mxu0
          %v1344 = vpop.f32.mrf.mxu0
          %1345 = vdwg.mxu0
          %1346 = vst [vmem:[%s14] sm:$0xff] %v1341
        $region96: #{_forward_impl.1} parent=75 // pred_fallthru
          _
        // Predicated region
        $region97: #{_forward_impl.1} parent=75 // pred_check
          %p1347 = pneg %p382
        $region98: #{_forward_impl.1} parent=75 // pred_check_branch
          %1349 = sbr.rel (%p1347) target = $region100
        $region99: #{_forward_impl.1} parent=75 // pred_region
          _
        $region100: #{_forward_impl.1} parent=75 // pred_fallthru
          _
        // Predicated region
        $region101: #{_forward_impl.1} parent=75 // pred_check
          %p1350 = pneg %p382
        $region102: #{_forward_impl.1} parent=75 // pred_check_branch
          %1352 = sbr.rel (%p1350) target = $region104
        $region103: #{_forward_impl.1} parent=75 // pred_region
          _
        $region104: #{_forward_impl.1} parent=75 // pred_fallthru
          _
      $region76: #{_forward_impl.1} parent=5 // pred_fallthru
        _
      %p1353 = scmp.le.s32.totalorder 2, %s23
      // Predicated region
      $region105: #{_forward_impl.1} parent=5 // pred_check
        %p1354 = pneg %p1353
      $region106: #{_forward_impl.1} parent=5 // pred_check_branch
        %1356 = sbr.rel (%p1354) target = $region108
      $region107: #{_forward_impl.1} parent=5 // pred_region
        %s1357 = ssub.s32 %s23, 2
      $region108: #{_forward_impl.1} parent=5 // pred_fallthru
        _
    $region6: #{_forward_impl.1} parent=1 // loop_footer
      %s27 = sadd.s32 1, %s23
    $region7: #{_forward_impl.1} parent=1 // loop_footer_branch
      %22 = sbr.rel target = $region3
    $region8: #{_forward_impl.1} parent=1 // loop_exit
      _
    %1358 = vsyncpa [#allocation6], 1
    %s1359 = scalar_lea.sflag [#allocation6], 1
    %1360 = vsyncpa %s1359, 1

</llo_original>
